<compile_context>
chip_gen: v6e
topology: v6e:2x2x1
jax: 0.10.0
libtpu: 0.0.40
codegen_flags: <defaults>
</compile_context>

<pallas_src>
import numpy as np

import jax
import jax.numpy as jnp
from jax import lax
from jax.experimental import pallas as pl
from jax.experimental.pallas import tpu as pltpu


# ----------------------------- fused Pallas kernel ---------------------------

def _cext_encoder_kernel(p1_ref, w1_ref, b1_ref, sel_ref, w2_ref, b2_ref,
                         wfc_ref, bfc_ref, out_ref):
    """Whole encoder for ONE sample; everything stays in VMEM / vregs.

    p1_ref : (1, P1, K1)  bf16  conv1 im2col patches (K1 zero-padded to 128)
    w1_ref : (K1, C)      bf16  conv1 weight as (C_in*k*k [padded], C_out)
    b1_ref : (1, C)       f32
    sel_ref: (T*P2, P1)   bf16  0/1 row-gather matrix: conv2 im2col as a GEMM
    w2_ref : (T, C, C)    bf16  conv2 per-tap weights, (kh,kw) -> (C_in, C_out)
    b2_ref : (1, C)       f32
    wfc_ref: (P2, C, L)   f32   FC weight split per spatial position
    bfc_ref: (1, L)       f32
    out_ref: (1, 1, L)    f32   latents row for this sample
    """
    n_taps, _, c_hid = w2_ref.shape
    n_pos, _, latent = wfc_ref.shape

    # ---- conv1: one bf16 MXU GEMM, f32 accumulate, bias + ReLU on the VPU.
    h1 = jnp.dot(p1_ref[0], w1_ref[...], preferred_element_type=jnp.float32)
    h1 = jnp.maximum(h1 + b1_ref[...], 0.0)                    # (P1, C) f32
    h1b = h1.astype(jnp.bfloat16)

    # ---- conv2 (3x3, stride 2, pad 1): im2col == one selection GEMM that
    # gathers rows of h1 (zero rows for padded taps), then 9 per-tap GEMMs.
    g = jnp.dot(sel_ref[...], h1b, preferred_element_type=jnp.float32)  # (T*P2, C)
    acc2 = jnp.zeros((n_pos, c_hid), jnp.float32)
    for t in range(n_taps):                                     # unrolled (9)
        g_t = g[t * n_pos:(t + 1) * n_pos, :].astype(jnp.bfloat16)
        acc2 = acc2 + jnp.dot(g_t, w2_ref[t],
                              preferred_element_type=jnp.float32)
    h2 = jnp.maximum(acc2 + b2_ref[...], 0.0)                   # (P2, C) f32

    # ---- FC over the NCHW-flattened features: one small dot per spatial
    # position (rows of h2 are spatial positions, so no reshape is needed).
    accf = jnp.zeros((1, latent), jnp.float32)
    for s in range(n_pos):                                      # unrolled (16)
        accf = accf + jnp.dot(h2[s:s + 1, :], wfc_ref[s],
                              preferred_element_type=jnp.float32)
    out_ref[0] = accf + bfc_ref[...]


def _encoder_pallas(prep, patches):
    """patches: (N, P1, K1) bf16 -> latents (N, L) f32 via one fused kernel."""
    n, p1, k1 = patches.shape
    latent = prep["bfc"].shape[1]
    out = pl.pallas_call(
        _cext_encoder_kernel,
        out_shape=jax.ShapeDtypeStruct((n, 1, latent), jnp.float32),
        grid=(n,),
        in_specs=[
            pl.BlockSpec((1, p1, k1), lambda i: (i, 0, 0)),     # per-sample patches
            pl.BlockSpec(prep["w1"].shape, lambda i: (0, 0)),   # resident weights
            pl.BlockSpec(prep["b1"].shape, lambda i: (0, 0)),
            pl.BlockSpec(prep["sel2"].shape, lambda i: (0, 0)),
            pl.BlockSpec(prep["w2"].shape, lambda i: (0, 0, 0)),
            pl.BlockSpec(prep["b2"].shape, lambda i: (0, 0)),
            pl.BlockSpec(prep["wfc"].shape, lambda i: (0, 0, 0)),
            pl.BlockSpec(prep["bfc"].shape, lambda i: (0, 0)),
        ],
        out_specs=pl.BlockSpec((1, 1, latent), lambda i: (i, 0, 0)),
        compiler_params=pltpu.CompilerParams(
            dimension_semantics=("parallel",)),   # batch axis -> both TCs on v7x
    )(patches, prep["w1"], prep["b1"], prep["sel2"], prep["w2"],
      prep["b2"], prep["wfc"], prep["bfc"])
    return out[:, 0, :]


# ------------------------------ JAX glue --------------------------------------

def _im2col_nchw(x, k, stride, pad):
    """(N,C,H,W) -> (N, Hout*Wout, C*k*k).  Feature order (C-major, kh, kw)
    matches torch weight.reshape(C_out, -1); rows are (oh, ow) row-major."""
    n, c, h, w = x.shape
    xp = jnp.pad(x, ((0, 0), (0, 0), (pad, pad), (pad, pad)))
    hout = (h + 2 * pad - k) // stride + 1
    wout = (w + 2 * pad - k) // stride + 1
    cols = []
    for ki in range(k):
        for kj in range(k):
            cols.append(xp[:, :, ki:ki + stride * hout:stride,
                               kj:kj + stride * wout:stride])   # (N,C,hout,wout)
    col = jnp.stack(cols, axis=2)                   # (N, C, k*k, hout, wout)
    col = col.reshape(n, c * k * k, hout * wout)
    return col.transpose(0, 2, 1), hout, wout       # (N, hout*wout, C*k*k)


def cext_forward(prep, x_nchw):
    """CExt.forward: cs = encoder(x)[0]; return {'LATENTS': cs}."""
    # conv1 im2col on the raw input is the only wrapper-side layout op; it is
    # a handful of fused XLA ops on ~4 KB.  Everything else is one pallas_call.
    patches, _, _ = _im2col_nchw(x_nchw, k=3, stride=2, pad=1)  # (N, 64, 36)
    k1 = prep["w1"].shape[0]
    patches = jnp.pad(patches, ((0, 0), (0, 0), (0, k1 - patches.shape[2])))
    patches = patches.astype(jnp.bfloat16)          # bf16 MXU operand
    latents = _encoder_pallas(prep, patches)
    return {"LATENTS": latents}
    # TODO(synk): get_loss (Class_Match) / start_optim (Adam) are training-time
    # utilities with no forward-pass Pallas equivalent; not implemented.


# ------------------------------ parameters ------------------------------------

def init_params(key, c_in=4, c_hid=32, latent_dim=16, spatial=16):
    """PyTorch-layout parameters of the representative encoder."""
    ks = jax.random.split(key, 6)
    s_after = spatial // 4                      # two stride-2 convs
    flat = c_hid * s_after * s_after
    scale = 0.05
    return {
        "conv1_w": scale * jax.random.normal(ks[0], (c_hid, c_in, 3, 3), jnp.float32),
        "conv1_b": scale * jax.random.normal(ks[1], (c_hid,), jnp.float32),
        "conv2_w": scale * jax.random.normal(ks[2], (c_hid, c_hid, 3, 3), jnp.float32),
        "conv2_b": scale * jax.random.normal(ks[3], (c_hid,), jnp.float32),
        "fc_w": scale * jax.random.normal(ks[4], (latent_dim, flat), jnp.float32),
        "fc_b": scale * jax.random.normal(ks[5], (latent_dim,), jnp.float32),
    }


def prepare_params(params, *, spatial=16, k=3, stride=2, pad=1, k1_pad=128):
    """One-time repack of PyTorch-layout weights into kernel layout
    (reshape / transpose / zero-pad / bf16 cast) + the conv2 selection matrix.
    Called once, outside the jitted forward."""
    c_hid, c_in = params["conv1_w"].shape[0], params["conv1_w"].shape[1]
    latent = params["fc_b"].shape[0]
    s1 = spatial // stride                      # conv1 output spatial (8)
    s2 = s1 // stride                           # conv2 output spatial (4)

    # conv1: (C_out, C_in, k, k) -> (C_in*k*k, C_out), K zero-padded to 128.
    w1 = params["conv1_w"].reshape(c_hid, c_in * k * k).T
    w1 = jnp.pad(w1, ((0, k1_pad - c_in * k * k), (0, 0))).astype(jnp.bfloat16)

    # conv2: per-tap (kh, kw) weights as (C_in, C_out).
    w2 = params["conv2_w"].transpose(2, 3, 1, 0).reshape(
        k * k, c_hid, c_hid).astype(jnp.bfloat16)

    # FC: (L, C*s2*s2) [NCHW flatten] -> per-spatial-position (s2*s2, C, L).
    wfc = params["fc_w"].reshape(latent, c_hid, s2, s2).transpose(
        2, 3, 1, 0).reshape(s2 * s2, c_hid, latent)

    # conv2 im2col as a 0/1 row-gather matrix over conv1's (s1 x s1) grid.
    # Row index = tap*(s2*s2) + (oh*s2 + ow); column = ih*s1 + iw; all-zero row
    # for padding taps.
    sel = np.zeros((k * k, s2 * s2, s1 * s1), np.float32)
    for kh in range(k):
        for kw in range(k):
            for oh in range(s2):
                for ow in range(s2):
                    ih = oh * stride + kh - pad
                    iw = ow * stride + kw - pad
                    if 0 <= ih < s1 and 0 <= iw < s1:
                        sel[kh * k + kw, oh * s2 + ow, ih * s1 + iw] = 1.0
    sel = jnp.asarray(sel.reshape(k * k * s2 * s2, s1 * s1), jnp.bfloat16)

    return {
        "w1": w1,
        "b1": params["conv1_b"].reshape(1, c_hid),
        "sel2": sel,
        "w2": w2,
        "b2": params["conv2_b"].reshape(1, c_hid),
        "wfc": wfc,
        "bfc": params["fc_b"].reshape(1, latent),
    }


# ------------------------- pure-JAX reference (f32) ---------------------------

def _reference_forward(params, x):
    dn = ("NCHW", "OIHW", "NCHW")
    y = lax.conv_general_dilated(x, params["conv1_w"], (2, 2),
                                 ((1, 1), (1, 1)), dimension_numbers=dn)
    y = jnp.maximum(y + params["conv1_b"][None, :, None, None], 0.0)
    y = lax.conv_general_dilated(y, params["conv2_w"], (2, 2),
                                 ((1, 1), (1, 1)), dimension_numbers=dn)
    y = jnp.maximum(y + params["conv2_b"][None, :, None, None], 0.0)
    y = y.reshape(y.shape[0], -1)
    return y @ params["fc_w"].T + params["fc_b"]


# --------------------------------- main ----------------------------------------

if __name__ == "__main__":
    key = jax.random.PRNGKey(0)
    k_param, k_x = jax.random.split(key)
    params = init_params(k_param, c_in=4, c_hid=32, latent_dim=16, spatial=16)
    prep = prepare_params(params, spatial=16)        # one-time weight repack
    x = jax.random.normal(k_x, (2, 4, 16, 16), jnp.float32)   # NCHW input

    out = jax.jit(cext_forward)(prep, x)
    latents = jax.block_until_ready(out["LATENTS"])
    assert latents.shape == (2, 16) and latents.dtype == jnp.float32

    # Sanity check vs. a pure-JAX f32 reference (loose tol: bf16 MXU operands).
    ref = _reference_forward(params, x)
    np.testing.assert_allclose(np.asarray(latents), np.asarray(ref),
                               atol=1e-2, rtol=2e-2)
    print("KERNEL_OK")
</pallas_src>

<mosaic_0001>
module attributes {stable_mosaic.version = 11 : i64} {
  func.func @_cext_encoder_kernel(%arg0: i32, %arg1: memref<1x64x128xbf16, #tpu.memory_space<vmem>>, %arg2: memref<128x32xbf16, #tpu.memory_space<vmem>>, %arg3: memref<1x32xf32, #tpu.memory_space<vmem>>, %arg4: memref<144x64xbf16, #tpu.memory_space<vmem>>, %arg5: memref<9x32x32xbf16, #tpu.memory_space<vmem>>, %arg6: memref<1x32xf32, #tpu.memory_space<vmem>>, %arg7: memref<16x32x16xf32, #tpu.memory_space<vmem>>, %arg8: memref<1x16xf32, #tpu.memory_space<vmem>>, %arg9: memref<1x1x16xf32, #tpu.memory_space<vmem>>) attributes {dimension_semantics = [#tpu.dimension_semantics<parallel>], iteration_bounds = array<i64: 2>, scalar_prefetch = 0 : i64, scratch_operands = 0 : i64, tpu.core_type = #tpu.core_type<tc>, window_params = [{transform_indices = @transform_0, window_bounds = array<i64: 1, 64, 128>}, {pipeline_mode = #tpu.pipeline_mode<synchronous>, transform_indices = @transform_1, window_bounds = array<i64: 128, 32>}, {pipeline_mode = #tpu.pipeline_mode<synchronous>, transform_indices = @transform_2, window_bounds = array<i64: 1, 32>}, {pipeline_mode = #tpu.pipeline_mode<synchronous>, transform_indices = @transform_3, window_bounds = array<i64: 144, 64>}, {pipeline_mode = #tpu.pipeline_mode<synchronous>, transform_indices = @transform_4, window_bounds = array<i64: 9, 32, 32>}, {pipeline_mode = #tpu.pipeline_mode<synchronous>, transform_indices = @transform_5, window_bounds = array<i64: 1, 32>}, {pipeline_mode = #tpu.pipeline_mode<synchronous>, transform_indices = @transform_6, window_bounds = array<i64: 16, 32, 16>}, {pipeline_mode = #tpu.pipeline_mode<synchronous>, transform_indices = @transform_7, window_bounds = array<i64: 1, 16>}, {transform_indices = @transform_8, window_bounds = array<i64: 1, 1, 16>}]} {
    %c0 = arith.constant 0 : index
    %c0_0 = arith.constant 0 : index
    %c0_1 = arith.constant 0 : index
    %0 = vector.load %arg1[%c0, %c0_0, %c0_1] : memref<1x64x128xbf16, #tpu.memory_space<vmem>>, vector<1x64x128xbf16>
    %1 = vector.shape_cast %0 : vector<1x64x128xbf16> to vector<64x128xbf16>
    %c0_2 = arith.constant 0 : index
    %c0_3 = arith.constant 0 : index
    %2 = vector.load %arg2[%c0_2, %c0_3] : memref<128x32xbf16, #tpu.memory_space<vmem>>, vector<128x32xbf16>
    %cst = arith.constant dense<0.000000e+00> : vector<64x32xf32>
    %3 = tpu.matmul %1, %2, %cst {dimension_numbers = #tpu.dot_dimension_numbers<[1], [0], [0], [1], [0, 0, 1, 1], [], []>} : vector<64x128xbf16>, vector<128x32xbf16>, vector<64x32xf32> -> vector<64x32xf32>
    %c0_4 = arith.constant 0 : index
    %c0_5 = arith.constant 0 : index
    %4 = vector.load %arg3[%c0_4, %c0_5] : memref<1x32xf32, #tpu.memory_space<vmem>>, vector<1x32xf32>
    %5 = vector.broadcast %4 : vector<1x32xf32> to vector<64x32xf32>
    %6 = arith.addf %3, %5 : vector<64x32xf32>
    %cst_6 = arith.constant 0.000000e+00 : f32
    %7 = vector.broadcast %cst_6 : f32 to vector<64x32xf32>
    %8 = arith.maximumf %6, %7 : vector<64x32xf32>
    %9 = arith.truncf %8 : vector<64x32xf32> to vector<64x32xbf16>
    %c0_7 = arith.constant 0 : index
    %c0_8 = arith.constant 0 : index
    %10 = vector.load %arg4[%c0_7, %c0_8] : memref<144x64xbf16, #tpu.memory_space<vmem>>, vector<144x64xbf16>
    %cst_9 = arith.constant dense<0.000000e+00> : vector<144x32xf32>
    %11 = tpu.matmul %10, %9, %cst_9 {dimension_numbers = #tpu.dot_dimension_numbers<[1], [0], [0], [1], [0, 0, 1, 1], [], []>} : vector<144x64xbf16>, vector<64x32xbf16>, vector<144x32xf32> -> vector<144x32xf32>
    %cst_10 = arith.constant 0.000000e+00 : f32
    %12 = vector.broadcast %cst_10 : f32 to vector<16x32xf32>
    %13 = vector.extract_strided_slice %11 {offsets = [0, 0], sizes = [16, 32], strides = [1, 1]} : vector<144x32xf32> to vector<16x32xf32>
    %14 = arith.truncf %13 : vector<16x32xf32> to vector<16x32xbf16>
    %c0_11 = arith.constant 0 : index
    %c0_12 = arith.constant 0 : index
    %c0_13 = arith.constant 0 : index
    %15 = vector.load %arg5[%c0_11, %c0_12, %c0_13] : memref<9x32x32xbf16, #tpu.memory_space<vmem>>, vector<1x32x32xbf16>
    %16 = vector.shape_cast %15 : vector<1x32x32xbf16> to vector<32x32xbf16>
    %cst_14 = arith.constant dense<0.000000e+00> : vector<16x32xf32>
    %17 = tpu.matmul %14, %16, %cst_14 {dimension_numbers = #tpu.dot_dimension_numbers<[1], [0], [0], [1], [0, 0, 1, 1], [], []>} : vector<16x32xbf16>, vector<32x32xbf16>, vector<16x32xf32> -> vector<16x32xf32>
    %18 = arith.addf %12, %17 : vector<16x32xf32>
    %19 = vector.extract_strided_slice %11 {offsets = [16, 0], sizes = [16, 32], strides = [1, 1]} : vector<144x32xf32> to vector<16x32xf32>
    %20 = arith.truncf %19 : vector<16x32xf32> to vector<16x32xbf16>
    %c1 = arith.constant 1 : index
    %c0_15 = arith.constant 0 : index
    %c0_16 = arith.constant 0 : index
    %21 = vector.load %arg5[%c1, %c0_15, %c0_16] : memref<9x32x32xbf16, #tpu.memory_space<vmem>>, vector<1x32x32xbf16>
    %22 = vector.shape_cast %21 : vector<1x32x32xbf16> to vector<32x32xbf16>
    %cst_17 = arith.constant dense<0.000000e+00> : vector<16x32xf32>
    %23 = tpu.matmul %20, %22, %cst_17 {dimension_numbers = #tpu.dot_dimension_numbers<[1], [0], [0], [1], [0, 0, 1, 1], [], []>} : vector<16x32xbf16>, vector<32x32xbf16>, vector<16x32xf32> -> vector<16x32xf32>
    %24 = arith.addf %18, %23 : vector<16x32xf32>
    %25 = vector.extract_strided_slice %11 {offsets = [32, 0], sizes = [16, 32], strides = [1, 1]} : vector<144x32xf32> to vector<16x32xf32>
    %26 = arith.truncf %25 : vector<16x32xf32> to vector<16x32xbf16>
    %c2 = arith.constant 2 : index
    %c0_18 = arith.constant 0 : index
    %c0_19 = arith.constant 0 : index
    %27 = vector.load %arg5[%c2, %c0_18, %c0_19] : memref<9x32x32xbf16, #tpu.memory_space<vmem>>, vector<1x32x32xbf16>
    %28 = vector.shape_cast %27 : vector<1x32x32xbf16> to vector<32x32xbf16>
    %cst_20 = arith.constant dense<0.000000e+00> : vector<16x32xf32>
    %29 = tpu.matmul %26, %28, %cst_20 {dimension_numbers = #tpu.dot_dimension_numbers<[1], [0], [0], [1], [0, 0, 1, 1], [], []>} : vector<16x32xbf16>, vector<32x32xbf16>, vector<16x32xf32> -> vector<16x32xf32>
    %30 = arith.addf %24, %29 : vector<16x32xf32>
    %31 = vector.extract_strided_slice %11 {offsets = [48, 0], sizes = [16, 32], strides = [1, 1]} : vector<144x32xf32> to vector<16x32xf32>
    %32 = arith.truncf %31 : vector<16x32xf32> to vector<16x32xbf16>
    %c3 = arith.constant 3 : index
    %c0_21 = arith.constant 0 : index
    %c0_22 = arith.constant 0 : index
    %33 = vector.load %arg5[%c3, %c0_21, %c0_22] : memref<9x32x32xbf16, #tpu.memory_space<vmem>>, vector<1x32x32xbf16>
    %34 = vector.shape_cast %33 : vector<1x32x32xbf16> to vector<32x32xbf16>
    %cst_23 = arith.constant dense<0.000000e+00> : vector<16x32xf32>
    %35 = tpu.matmul %32, %34, %cst_23 {dimension_numbers = #tpu.dot_dimension_numbers<[1], [0], [0], [1], [0, 0, 1, 1], [], []>} : vector<16x32xbf16>, vector<32x32xbf16>, vector<16x32xf32> -> vector<16x32xf32>
    %36 = arith.addf %30, %35 : vector<16x32xf32>
    %37 = vector.extract_strided_slice %11 {offsets = [64, 0], sizes = [16, 32], strides = [1, 1]} : vector<144x32xf32> to vector<16x32xf32>
    %38 = arith.truncf %37 : vector<16x32xf32> to vector<16x32xbf16>
    %c4 = arith.constant 4 : index
    %c0_24 = arith.constant 0 : index
    %c0_25 = arith.constant 0 : index
    %39 = vector.load %arg5[%c4, %c0_24, %c0_25] : memref<9x32x32xbf16, #tpu.memory_space<vmem>>, vector<1x32x32xbf16>
    %40 = vector.shape_cast %39 : vector<1x32x32xbf16> to vector<32x32xbf16>
    %cst_26 = arith.constant dense<0.000000e+00> : vector<16x32xf32>
    %41 = tpu.matmul %38, %40, %cst_26 {dimension_numbers = #tpu.dot_dimension_numbers<[1], [0], [0], [1], [0, 0, 1, 1], [], []>} : vector<16x32xbf16>, vector<32x32xbf16>, vector<16x32xf32> -> vector<16x32xf32>
    %42 = arith.addf %36, %41 : vector<16x32xf32>
    %43 = vector.extract_strided_slice %11 {offsets = [80, 0], sizes = [16, 32], strides = [1, 1]} : vector<144x32xf32> to vector<16x32xf32>
    %44 = arith.truncf %43 : vector<16x32xf32> to vector<16x32xbf16>
    %c5 = arith.constant 5 : index
    %c0_27 = arith.constant 0 : index
    %c0_28 = arith.constant 0 : index
    %45 = vector.load %arg5[%c5, %c0_27, %c0_28] : memref<9x32x32xbf16, #tpu.memory_space<vmem>>, vector<1x32x32xbf16>
    %46 = vector.shape_cast %45 : vector<1x32x32xbf16> to vector<32x32xbf16>
    %cst_29 = arith.constant dense<0.000000e+00> : vector<16x32xf32>
    %47 = tpu.matmul %44, %46, %cst_29 {dimension_numbers = #tpu.dot_dimension_numbers<[1], [0], [0], [1], [0, 0, 1, 1], [], []>} : vector<16x32xbf16>, vector<32x32xbf16>, vector<16x32xf32> -> vector<16x32xf32>
    %48 = arith.addf %42, %47 : vector<16x32xf32>
    %49 = vector.extract_strided_slice %11 {offsets = [96, 0], sizes = [16, 32], strides = [1, 1]} : vector<144x32xf32> to vector<16x32xf32>
    %50 = arith.truncf %49 : vector<16x32xf32> to vector<16x32xbf16>
    %c6 = arith.constant 6 : index
    %c0_30 = arith.constant 0 : index
    %c0_31 = arith.constant 0 : index
    %51 = vector.load %arg5[%c6, %c0_30, %c0_31] : memref<9x32x32xbf16, #tpu.memory_space<vmem>>, vector<1x32x32xbf16>
    %52 = vector.shape_cast %51 : vector<1x32x32xbf16> to vector<32x32xbf16>
    %cst_32 = arith.constant dense<0.000000e+00> : vector<16x32xf32>
    %53 = tpu.matmul %50, %52, %cst_32 {dimension_numbers = #tpu.dot_dimension_numbers<[1], [0], [0], [1], [0, 0, 1, 1], [], []>} : vector<16x32xbf16>, vector<32x32xbf16>, vector<16x32xf32> -> vector<16x32xf32>
    %54 = arith.addf %48, %53 : vector<16x32xf32>
    %55 = vector.extract_strided_slice %11 {offsets = [112, 0], sizes = [16, 32], strides = [1, 1]} : vector<144x32xf32> to vector<16x32xf32>
    %56 = arith.truncf %55 : vector<16x32xf32> to vector<16x32xbf16>
    %c7 = arith.constant 7 : index
    %c0_33 = arith.constant 0 : index
    %c0_34 = arith.constant 0 : index
    %57 = vector.load %arg5[%c7, %c0_33, %c0_34] : memref<9x32x32xbf16, #tpu.memory_space<vmem>>, vector<1x32x32xbf16>
    %58 = vector.shape_cast %57 : vector<1x32x32xbf16> to vector<32x32xbf16>
    %cst_35 = arith.constant dense<0.000000e+00> : vector<16x32xf32>
    %59 = tpu.matmul %56, %58, %cst_35 {dimension_numbers = #tpu.dot_dimension_numbers<[1], [0], [0], [1], [0, 0, 1, 1], [], []>} : vector<16x32xbf16>, vector<32x32xbf16>, vector<16x32xf32> -> vector<16x32xf32>
    %60 = arith.addf %54, %59 : vector<16x32xf32>
    %61 = vector.extract_strided_slice %11 {offsets = [128, 0], sizes = [16, 32], strides = [1, 1]} : vector<144x32xf32> to vector<16x32xf32>
    %62 = arith.truncf %61 : vector<16x32xf32> to vector<16x32xbf16>
    %c8 = arith.constant 8 : index
    %c0_36 = arith.constant 0 : index
    %c0_37 = arith.constant 0 : index
    %63 = vector.load %arg5[%c8, %c0_36, %c0_37] : memref<9x32x32xbf16, #tpu.memory_space<vmem>>, vector<1x32x32xbf16>
    %64 = vector.shape_cast %63 : vector<1x32x32xbf16> to vector<32x32xbf16>
    %cst_38 = arith.constant dense<0.000000e+00> : vector<16x32xf32>
    %65 = tpu.matmul %62, %64, %cst_38 {dimension_numbers = #tpu.dot_dimension_numbers<[1], [0], [0], [1], [0, 0, 1, 1], [], []>} : vector<16x32xbf16>, vector<32x32xbf16>, vector<16x32xf32> -> vector<16x32xf32>
    %66 = arith.addf %60, %65 : vector<16x32xf32>
    %c0_39 = arith.constant 0 : index
    %c0_40 = arith.constant 0 : index
    %67 = vector.load %arg6[%c0_39, %c0_40] : memref<1x32xf32, #tpu.memory_space<vmem>>, vector<1x32xf32>
    %68 = vector.broadcast %67 : vector<1x32xf32> to vector<16x32xf32>
    %69 = arith.addf %66, %68 : vector<16x32xf32>
    %cst_41 = arith.constant 0.000000e+00 : f32
    %70 = vector.broadcast %cst_41 : f32 to vector<16x32xf32>
    %71 = arith.maximumf %69, %70 : vector<16x32xf32>
    %cst_42 = arith.constant 0.000000e+00 : f32
    %72 = vector.broadcast %cst_42 : f32 to vector<1x16xf32>
    %73 = vector.extract_strided_slice %71 {offsets = [0, 0], sizes = [1, 32], strides = [1, 1]} : vector<16x32xf32> to vector<1x32xf32>
    %c0_43 = arith.constant 0 : index
    %c0_44 = arith.constant 0 : index
    %c0_45 = arith.constant 0 : index
    %74 = vector.load %arg7[%c0_43, %c0_44, %c0_45] : memref<16x32x16xf32, #tpu.memory_space<vmem>>, vector<1x32x16xf32>
    %75 = vector.shape_cast %74 : vector<1x32x16xf32> to vector<32x16xf32>
    %cst_46 = arith.constant dense<0.000000e+00> : vector<1x16xf32>
    %76 = tpu.matmul %73, %75, %cst_46 {dimension_numbers = #tpu.dot_dimension_numbers<[1], [0], [0], [1], [0, 0, 1, 1], [], []>} : vector<1x32xf32>, vector<32x16xf32>, vector<1x16xf32> -> vector<1x16xf32>
    %77 = arith.addf %72, %76 : vector<1x16xf32>
    %78 = vector.extract_strided_slice %71 {offsets = [1, 0], sizes = [1, 32], strides = [1, 1]} : vector<16x32xf32> to vector<1x32xf32>
    %c1_47 = arith.constant 1 : index
    %c0_48 = arith.constant 0 : index
    %c0_49 = arith.constant 0 : index
    %79 = vector.load %arg7[%c1_47, %c0_48, %c0_49] : memref<16x32x16xf32, #tpu.memory_space<vmem>>, vector<1x32x16xf32>
    %80 = vector.shape_cast %79 : vector<1x32x16xf32> to vector<32x16xf32>
    %cst_50 = arith.constant dense<0.000000e+00> : vector<1x16xf32>
    %81 = tpu.matmul %78, %80, %cst_50 {dimension_numbers = #tpu.dot_dimension_numbers<[1], [0], [0], [1], [0, 0, 1, 1], [], []>} : vector<1x32xf32>, vector<32x16xf32>, vector<1x16xf32> -> vector<1x16xf32>
    %82 = arith.addf %77, %81 : vector<1x16xf32>
    %83 = vector.extract_strided_slice %71 {offsets = [2, 0], sizes = [1, 32], strides = [1, 1]} : vector<16x32xf32> to vector<1x32xf32>
    %c2_51 = arith.constant 2 : index
    %c0_52 = arith.constant 0 : index
    %c0_53 = arith.constant 0 : index
    %84 = vector.load %arg7[%c2_51, %c0_52, %c0_53] : memref<16x32x16xf32, #tpu.memory_space<vmem>>, vector<1x32x16xf32>
    %85 = vector.shape_cast %84 : vector<1x32x16xf32> to vector<32x16xf32>
    %cst_54 = arith.constant dense<0.000000e+00> : vector<1x16xf32>
    %86 = tpu.matmul %83, %85, %cst_54 {dimension_numbers = #tpu.dot_dimension_numbers<[1], [0], [0], [1], [0, 0, 1, 1], [], []>} : vector<1x32xf32>, vector<32x16xf32>, vector<1x16xf32> -> vector<1x16xf32>
    %87 = arith.addf %82, %86 : vector<1x16xf32>
    %88 = vector.extract_strided_slice %71 {offsets = [3, 0], sizes = [1, 32], strides = [1, 1]} : vector<16x32xf32> to vector<1x32xf32>
    %c3_55 = arith.constant 3 : index
    %c0_56 = arith.constant 0 : index
    %c0_57 = arith.constant 0 : index
    %89 = vector.load %arg7[%c3_55, %c0_56, %c0_57] : memref<16x32x16xf32, #tpu.memory_space<vmem>>, vector<1x32x16xf32>
    %90 = vector.shape_cast %89 : vector<1x32x16xf32> to vector<32x16xf32>
    %cst_58 = arith.constant dense<0.000000e+00> : vector<1x16xf32>
    %91 = tpu.matmul %88, %90, %cst_58 {dimension_numbers = #tpu.dot_dimension_numbers<[1], [0], [0], [1], [0, 0, 1, 1], [], []>} : vector<1x32xf32>, vector<32x16xf32>, vector<1x16xf32> -> vector<1x16xf32>
    %92 = arith.addf %87, %91 : vector<1x16xf32>
    %93 = vector.extract_strided_slice %71 {offsets = [4, 0], sizes = [1, 32], strides = [1, 1]} : vector<16x32xf32> to vector<1x32xf32>
    %c4_59 = arith.constant 4 : index
    %c0_60 = arith.constant 0 : index
    %c0_61 = arith.constant 0 : index
    %94 = vector.load %arg7[%c4_59, %c0_60, %c0_61] : memref<16x32x16xf32, #tpu.memory_space<vmem>>, vector<1x32x16xf32>
    %95 = vector.shape_cast %94 : vector<1x32x16xf32> to vector<32x16xf32>
    %cst_62 = arith.constant dense<0.000000e+00> : vector<1x16xf32>
    %96 = tpu.matmul %93, %95, %cst_62 {dimension_numbers = #tpu.dot_dimension_numbers<[1], [0], [0], [1], [0, 0, 1, 1], [], []>} : vector<1x32xf32>, vector<32x16xf32>, vector<1x16xf32> -> vector<1x16xf32>
    %97 = arith.addf %92, %96 : vector<1x16xf32>
    %98 = vector.extract_strided_slice %71 {offsets = [5, 0], sizes = [1, 32], strides = [1, 1]} : vector<16x32xf32> to vector<1x32xf32>
    %c5_63 = arith.constant 5 : index
    %c0_64 = arith.constant 0 : index
    %c0_65 = arith.constant 0 : index
    %99 = vector.load %arg7[%c5_63, %c0_64, %c0_65] : memref<16x32x16xf32, #tpu.memory_space<vmem>>, vector<1x32x16xf32>
    %100 = vector.shape_cast %99 : vector<1x32x16xf32> to vector<32x16xf32>
    %cst_66 = arith.constant dense<0.000000e+00> : vector<1x16xf32>
    %101 = tpu.matmul %98, %100, %cst_66 {dimension_numbers = #tpu.dot_dimension_numbers<[1], [0], [0], [1], [0, 0, 1, 1], [], []>} : vector<1x32xf32>, vector<32x16xf32>, vector<1x16xf32> -> vector<1x16xf32>
    %102 = arith.addf %97, %101 : vector<1x16xf32>
    %103 = vector.extract_strided_slice %71 {offsets = [6, 0], sizes = [1, 32], strides = [1, 1]} : vector<16x32xf32> to vector<1x32xf32>
    %c6_67 = arith.constant 6 : index
    %c0_68 = arith.constant 0 : index
    %c0_69 = arith.constant 0 : index
    %104 = vector.load %arg7[%c6_67, %c0_68, %c0_69] : memref<16x32x16xf32, #tpu.memory_space<vmem>>, vector<1x32x16xf32>
    %105 = vector.shape_cast %104 : vector<1x32x16xf32> to vector<32x16xf32>
    %cst_70 = arith.constant dense<0.000000e+00> : vector<1x16xf32>
    %106 = tpu.matmul %103, %105, %cst_70 {dimension_numbers = #tpu.dot_dimension_numbers<[1], [0], [0], [1], [0, 0, 1, 1], [], []>} : vector<1x32xf32>, vector<32x16xf32>, vector<1x16xf32> -> vector<1x16xf32>
    %107 = arith.addf %102, %106 : vector<1x16xf32>
    %108 = vector.extract_strided_slice %71 {offsets = [7, 0], sizes = [1, 32], strides = [1, 1]} : vector<16x32xf32> to vector<1x32xf32>
    %c7_71 = arith.constant 7 : index
    %c0_72 = arith.constant 0 : index
    %c0_73 = arith.constant 0 : index
    %109 = vector.load %arg7[%c7_71, %c0_72, %c0_73] : memref<16x32x16xf32, #tpu.memory_space<vmem>>, vector<1x32x16xf32>
    %110 = vector.shape_cast %109 : vector<1x32x16xf32> to vector<32x16xf32>
    %cst_74 = arith.constant dense<0.000000e+00> : vector<1x16xf32>
    %111 = tpu.matmul %108, %110, %cst_74 {dimension_numbers = #tpu.dot_dimension_numbers<[1], [0], [0], [1], [0, 0, 1, 1], [], []>} : vector<1x32xf32>, vector<32x16xf32>, vector<1x16xf32> -> vector<1x16xf32>
    %112 = arith.addf %107, %111 : vector<1x16xf32>
    %113 = vector.extract_strided_slice %71 {offsets = [8, 0], sizes = [1, 32], strides = [1, 1]} : vector<16x32xf32> to vector<1x32xf32>
    %c8_75 = arith.constant 8 : index
    %c0_76 = arith.constant 0 : index
    %c0_77 = arith.constant 0 : index
    %114 = vector.load %arg7[%c8_75, %c0_76, %c0_77] : memref<16x32x16xf32, #tpu.memory_space<vmem>>, vector<1x32x16xf32>
    %115 = vector.shape_cast %114 : vector<1x32x16xf32> to vector<32x16xf32>
    %cst_78 = arith.constant dense<0.000000e+00> : vector<1x16xf32>
    %116 = tpu.matmul %113, %115, %cst_78 {dimension_numbers = #tpu.dot_dimension_numbers<[1], [0], [0], [1], [0, 0, 1, 1], [], []>} : vector<1x32xf32>, vector<32x16xf32>, vector<1x16xf32> -> vector<1x16xf32>
    %117 = arith.addf %112, %116 : vector<1x16xf32>
    %118 = vector.extract_strided_slice %71 {offsets = [9, 0], sizes = [1, 32], strides = [1, 1]} : vector<16x32xf32> to vector<1x32xf32>
    %c9 = arith.constant 9 : index
    %c0_79 = arith.constant 0 : index
    %c0_80 = arith.constant 0 : index
    %119 = vector.load %arg7[%c9, %c0_79, %c0_80] : memref<16x32x16xf32, #tpu.memory_space<vmem>>, vector<1x32x16xf32>
    %120 = vector.shape_cast %119 : vector<1x32x16xf32> to vector<32x16xf32>
    %cst_81 = arith.constant dense<0.000000e+00> : vector<1x16xf32>
    %121 = tpu.matmul %118, %120, %cst_81 {dimension_numbers = #tpu.dot_dimension_numbers<[1], [0], [0], [1], [0, 0, 1, 1], [], []>} : vector<1x32xf32>, vector<32x16xf32>, vector<1x16xf32> -> vector<1x16xf32>
    %122 = arith.addf %117, %121 : vector<1x16xf32>
    %123 = vector.extract_strided_slice %71 {offsets = [10, 0], sizes = [1, 32], strides = [1, 1]} : vector<16x32xf32> to vector<1x32xf32>
    %c10 = arith.constant 10 : index
    %c0_82 = arith.constant 0 : index
    %c0_83 = arith.constant 0 : index
    %124 = vector.load %arg7[%c10, %c0_82, %c0_83] : memref<16x32x16xf32, #tpu.memory_space<vmem>>, vector<1x32x16xf32>
    %125 = vector.shape_cast %124 : vector<1x32x16xf32> to vector<32x16xf32>
    %cst_84 = arith.constant dense<0.000000e+00> : vector<1x16xf32>
    %126 = tpu.matmul %123, %125, %cst_84 {dimension_numbers = #tpu.dot_dimension_numbers<[1], [0], [0], [1], [0, 0, 1, 1], [], []>} : vector<1x32xf32>, vector<32x16xf32>, vector<1x16xf32> -> vector<1x16xf32>
    %127 = arith.addf %122, %126 : vector<1x16xf32>
    %128 = vector.extract_strided_slice %71 {offsets = [11, 0], sizes = [1, 32], strides = [1, 1]} : vector<16x32xf32> to vector<1x32xf32>
    %c11 = arith.constant 11 : index
    %c0_85 = arith.constant 0 : index
    %c0_86 = arith.constant 0 : index
    %129 = vector.load %arg7[%c11, %c0_85, %c0_86] : memref<16x32x16xf32, #tpu.memory_space<vmem>>, vector<1x32x16xf32>
    %130 = vector.shape_cast %129 : vector<1x32x16xf32> to vector<32x16xf32>
    %cst_87 = arith.constant dense<0.000000e+00> : vector<1x16xf32>
    %131 = tpu.matmul %128, %130, %cst_87 {dimension_numbers = #tpu.dot_dimension_numbers<[1], [0], [0], [1], [0, 0, 1, 1], [], []>} : vector<1x32xf32>, vector<32x16xf32>, vector<1x16xf32> -> vector<1x16xf32>
    %132 = arith.addf %127, %131 : vector<1x16xf32>
    %133 = vector.extract_strided_slice %71 {offsets = [12, 0], sizes = [1, 32], strides = [1, 1]} : vector<16x32xf32> to vector<1x32xf32>
    %c12 = arith.constant 12 : index
    %c0_88 = arith.constant 0 : index
    %c0_89 = arith.constant 0 : index
    %134 = vector.load %arg7[%c12, %c0_88, %c0_89] : memref<16x32x16xf32, #tpu.memory_space<vmem>>, vector<1x32x16xf32>
    %135 = vector.shape_cast %134 : vector<1x32x16xf32> to vector<32x16xf32>
    %cst_90 = arith.constant dense<0.000000e+00> : vector<1x16xf32>
    %136 = tpu.matmul %133, %135, %cst_90 {dimension_numbers = #tpu.dot_dimension_numbers<[1], [0], [0], [1], [0, 0, 1, 1], [], []>} : vector<1x32xf32>, vector<32x16xf32>, vector<1x16xf32> -> vector<1x16xf32>
    %137 = arith.addf %132, %136 : vector<1x16xf32>
    %138 = vector.extract_strided_slice %71 {offsets = [13, 0], sizes = [1, 32], strides = [1, 1]} : vector<16x32xf32> to vector<1x32xf32>
    %c13 = arith.constant 13 : index
    %c0_91 = arith.constant 0 : index
    %c0_92 = arith.constant 0 : index
    %139 = vector.load %arg7[%c13, %c0_91, %c0_92] : memref<16x32x16xf32, #tpu.memory_space<vmem>>, vector<1x32x16xf32>
    %140 = vector.shape_cast %139 : vector<1x32x16xf32> to vector<32x16xf32>
    %cst_93 = arith.constant dense<0.000000e+00> : vector<1x16xf32>
    %141 = tpu.matmul %138, %140, %cst_93 {dimension_numbers = #tpu.dot_dimension_numbers<[1], [0], [0], [1], [0, 0, 1, 1], [], []>} : vector<1x32xf32>, vector<32x16xf32>, vector<1x16xf32> -> vector<1x16xf32>
    %142 = arith.addf %137, %141 : vector<1x16xf32>
    %143 = vector.extract_strided_slice %71 {offsets = [14, 0], sizes = [1, 32], strides = [1, 1]} : vector<16x32xf32> to vector<1x32xf32>
    %c14 = arith.constant 14 : index
    %c0_94 = arith.constant 0 : index
    %c0_95 = arith.constant 0 : index
    %144 = vector.load %arg7[%c14, %c0_94, %c0_95] : memref<16x32x16xf32, #tpu.memory_space<vmem>>, vector<1x32x16xf32>
    %145 = vector.shape_cast %144 : vector<1x32x16xf32> to vector<32x16xf32>
    %cst_96 = arith.constant dense<0.000000e+00> : vector<1x16xf32>
    %146 = tpu.matmul %143, %145, %cst_96 {dimension_numbers = #tpu.dot_dimension_numbers<[1], [0], [0], [1], [0, 0, 1, 1], [], []>} : vector<1x32xf32>, vector<32x16xf32>, vector<1x16xf32> -> vector<1x16xf32>
    %147 = arith.addf %142, %146 : vector<1x16xf32>
    %148 = vector.extract_strided_slice %71 {offsets = [15, 0], sizes = [1, 32], strides = [1, 1]} : vector<16x32xf32> to vector<1x32xf32>
    %c15 = arith.constant 15 : index
    %c0_97 = arith.constant 0 : index
    %c0_98 = arith.constant 0 : index
    %149 = vector.load %arg7[%c15, %c0_97, %c0_98] : memref<16x32x16xf32, #tpu.memory_space<vmem>>, vector<1x32x16xf32>
    %150 = vector.shape_cast %149 : vector<1x32x16xf32> to vector<32x16xf32>
    %cst_99 = arith.constant dense<0.000000e+00> : vector<1x16xf32>
    %151 = tpu.matmul %148, %150, %cst_99 {dimension_numbers = #tpu.dot_dimension_numbers<[1], [0], [0], [1], [0, 0, 1, 1], [], []>} : vector<1x32xf32>, vector<32x16xf32>, vector<1x16xf32> -> vector<1x16xf32>
    %152 = arith.addf %147, %151 : vector<1x16xf32>
    %c0_100 = arith.constant 0 : index
    %c0_101 = arith.constant 0 : index
    %153 = vector.load %arg8[%c0_100, %c0_101] : memref<1x16xf32, #tpu.memory_space<vmem>>, vector<1x16xf32>
    %154 = arith.addf %152, %153 : vector<1x16xf32>
    %c0_102 = arith.constant 0 : index
    %c0_103 = arith.constant 0 : index
    %c0_104 = arith.constant 0 : index
    %155 = vector.load %arg9[%c0_102, %c0_103, %c0_104] : memref<1x1x16xf32, #tpu.memory_space<vmem>>, vector<1x1x16xf32>
    %156 = vector.shape_cast %155 : vector<1x1x16xf32> to vector<1x16xf32>
    %157 = vector.shape_cast %154 : vector<1x16xf32> to vector<1x1x16xf32>
    tpu.vector_store %arg9[%c0_102, %c0_103, %c0_104], %157 {strides = array<i32>} : memref<1x1x16xf32, #tpu.memory_space<vmem>>, vector<1x1x16xf32>,
    return
  }
  func.func @transform_0(%arg0: i32) -> (i32, i32, i32) {
    %c0_i32 = arith.constant 0 : i32
    %c0_i32_0 = arith.constant 0 : i32
    %c0_i32_1 = arith.constant 0 : i32
    return %arg0, %c0_i32, %c0_i32_0 : i32, i32, i32
  }
  func.func @transform_1(%arg0: i32) -> (i32, i32) {
    %c0_i32 = arith.constant 0 : i32
    %c0_i32_0 = arith.constant 0 : i32
    %c0_i32_1 = arith.constant 0 : i32
    return %c0_i32, %c0_i32_0 : i32, i32
  }
  func.func @transform_2(%arg0: i32) -> (i32, i32) {
    %c0_i32 = arith.constant 0 : i32
    %c0_i32_0 = arith.constant 0 : i32
    %c0_i32_1 = arith.constant 0 : i32
    return %c0_i32, %c0_i32_0 : i32, i32
  }
  func.func @transform_3(%arg0: i32) -> (i32, i32) {
    %c0_i32 = arith.constant 0 : i32
    %c0_i32_0 = arith.constant 0 : i32
    %c0_i32_1 = arith.constant 0 : i32
    return %c0_i32, %c0_i32_0 : i32, i32
  }
  func.func @transform_4(%arg0: i32) -> (i32, i32, i32) {
    %c0_i32 = arith.constant 0 : i32
    %c0_i32_0 = arith.constant 0 : i32
    %c0_i32_1 = arith.constant 0 : i32
    %c0_i32_2 = arith.constant 0 : i32
    return %c0_i32, %c0_i32_0, %c0_i32_1 : i32, i32, i32
  }
  func.func @transform_5(%arg0: i32) -> (i32, i32) {
    %c0_i32 = arith.constant 0 : i32
    %c0_i32_0 = arith.constant 0 : i32
    %c0_i32_1 = arith.constant 0 : i32
    return %c0_i32, %c0_i32_0 : i32, i32
  }
  func.func @transform_6(%arg0: i32) -> (i32, i32, i32) {
    %c0_i32 = arith.constant 0 : i32
    %c0_i32_0 = arith.constant 0 : i32
    %c0_i32_1 = arith.constant 0 : i32
    %c0_i32_2 = arith.constant 0 : i32
    return %c0_i32, %c0_i32_0, %c0_i32_1 : i32, i32, i32
  }
  func.func @transform_7(%arg0: i32) -> (i32, i32) {
    %c0_i32 = arith.constant 0 : i32
    %c0_i32_0 = arith.constant 0 : i32
    %c0_i32_1 = arith.constant 0 : i32
    return %c0_i32, %c0_i32_0 : i32, i32
  }
  func.func @transform_8(%arg0: i32) -> (i32, i32, i32) {
    %c0_i32 = arith.constant 0 : i32
    %c0_i32_0 = arith.constant 0 : i32
    %c0_i32_1 = arith.constant 0 : i32
    return %arg0, %c0_i32, %c0_i32_0 : i32, i32, i32
  }
}

</mosaic_0001>

<llo_original>
// kernel: cext_forward.1
$region0: #{cext_forward.1}
  #allocation0 [shape = 'u32[]', space=smem, size = 0x4, offset = 0x4, fixed_abs, tag = 'smem constant byte address 0x4 - core index']
  #allocation1 [shape = 'u32[144,128]{1,0:T(1,128)}', space=vmem, size = 0x12000, scoped, tag = 'internal scratch']
  %s0 = inlined_call_operand.vmem [shape: bf16[2,64,128], index: 0, kind: input, shape index: {}]
  %s1 = inlined_call_operand.vmem [shape: bf16[128,32], index: 1, kind: input, shape index: {}]
  %s2 = inlined_call_operand.vmem [shape: f32[1,32], index: 2, kind: input, shape index: {}]
  %s3 = inlined_call_operand.vmem [shape: bf16[144,64], index: 3, kind: input, shape index: {}]
  %s4 = inlined_call_operand.vmem [shape: bf16[9,32,32], index: 4, kind: input, shape index: {}]
  %s5 = inlined_call_operand.vmem [shape: f32[1,32], index: 5, kind: input, shape index: {}]
  %s6 = inlined_call_operand.vmem [shape: f32[16,32,16], index: 6, kind: input, shape index: {}]
  %s7 = inlined_call_operand.vmem [shape: f32[1,16], index: 7, kind: input, shape index: {}]
  %s8 = inlined_call_operand.hbm [shape: f32[2,1,16], index: 8, kind: output, shape index: {}]
  %s9 = sld [smem:[#allocation0]]
  $region65: #{cext_forward.1} parent=0
    _
  %s11 = ssub.s32 1, %s9
  %s12 = scalar_select 0, %s11, %s9
  $region1: #{cext_forward.1} parent=0
    #allocation2 [shape = 'u8[1024]{0}', space=vmem, size = 0x400, scoped, tag = 'output window, operand 0']
    #allocation3 [shape = 's32[2]{0}', space=sflag, size = 0x8, scoped, tag = 'scoped memory for cext_forward.1']
    %13 = vsyncpa [#allocation3], 0
    %s14 = scalar_lea.sflag [#allocation3], 1
    %15 = vsyncpa %s14, 0
    loop: start=0, step=1, limit=4
    $region2: #{cext_forward.1} parent=1 // loop_pre_header
      _
    $region3: #{cext_forward.1} parent=1 // loop_header
      %s17 = sphi 0, %s21
      %p18 = scmp.ge.s32.totalorder %s17, 4
      %s27 = sphi 0, %s29
      %s30 = sphi 0, %s27
      %s31 = sphi 0, %s30
      %s47 = sphi 0, %s31
      %s51 = sphi 0, %s51
      %s53 = sphi 0, %s51
      %s54 = sphi 0, %s53
      %s68 = sphi 0, %s54
      %s72 = sphi 0, %s72
      %s74 = sphi 0, %s72
      %s75 = sphi 0, %s74
      %s89 = sphi 0, %s75
      %s93 = sphi 0, %s93
      %s95 = sphi 0, %s93
      %s96 = sphi 0, %s95
      %s110 = sphi 0, %s96
      %s114 = sphi 0, %s114
      %s116 = sphi 0, %s114
      %s117 = sphi 0, %s116
      %s131 = sphi 0, %s117
      %s135 = sphi 0, %s135
      %s137 = sphi 0, %s135
      %s138 = sphi 0, %s137
      %s152 = sphi 0, %s138
      %s156 = sphi 0, %s156
      %s158 = sphi 0, %s156
      %s159 = sphi 0, %s158
      %s173 = sphi 0, %s159
      %s177 = sphi 0, %s177
      %s179 = sphi 0, %s177
      %s180 = sphi 0, %s179
      %s194 = sphi 0, %s180
      %s200 = sphi 0, %s202
      %s203 = sphi 0, %s200
      %s204 = sphi 0, %s203
      %s220 = sphi 0, %s204
    $region4: #{cext_forward.1} parent=1 // loop_header_branch
      %20 = sbr.rel (%p18) target = $region8
    $region5: #{cext_forward.1} parent=1 // loop_body
      %s22 = ssub.s32 %s17, 1
      %s23 = ssub.s32 %s17, 2
      %s24 = sadd.s32 %s17, 1
      %s25 = ssub.s32 %s17, %s24
      %p26 = scmp.eq.s32.totalorder %s25, 0
      %s28 = sadd.s32 %s27, 1
      %s29 = scalar_select %p26, %s27, %s28
      %p32 = pneg %p26
      %p33 = scmp.eq.s32.totalorder %s17, 1
      %p34 = por %p32, %p33
      %p35 = scmp.ne.s32.totalorder %s27, %s30
      %p36 = scmp.eq.s32.totalorder %s17, 0
      %p37 = por %p35, %p36
      %p38 = scmp.ne.s32.totalorder %s27, %s30
      %p39 = scmp.eq.s32.totalorder %s22, 1
      %p40 = por %p38, %p39
      %p41 = scmp.ne.s32.totalorder %s30, %s31
      %p42 = scmp.eq.s32.totalorder %s22, 0
      %p43 = por %p41, %p42
      %p44 = scmp.ne.s32.totalorder %s30, %s31
      %p45 = scmp.eq.s32.totalorder %s23, 1
      %p46 = por %p44, %p45
      %p48 = scmp.ne.s32.totalorder %s31, %s47
      %p49 = scmp.eq.s32.totalorder %s23, 0
      %p50 = por %p48, %p49
      %s52 = sadd.s32 %s51, 1
      %p55 = scmp.eq.s32.totalorder %s17, 1
      %p56 = scmp.ne.s32.totalorder %s51, %s53
      %p57 = scmp.eq.s32.totalorder %s17, 0
      %p58 = por %p56, %p57
      %p59 = scmp.ne.s32.totalorder %s51, %s53
      %p60 = scmp.eq.s32.totalorder %s22, 1
      %p61 = por %p59, %p60
      %p62 = scmp.ne.s32.totalorder %s53, %s54
      %p63 = scmp.eq.s32.totalorder %s22, 0
      %p64 = por %p62, %p63
      %p65 = scmp.ne.s32.totalorder %s53, %s54
      %p66 = scmp.eq.s32.totalorder %s23, 1
      %p67 = por %p65, %p66
      %p69 = scmp.ne.s32.totalorder %s54, %s68
      %p70 = scmp.eq.s32.totalorder %s23, 0
      %p71 = por %p69, %p70
      %s73 = sadd.s32 %s72, 1
      %p76 = scmp.eq.s32.totalorder %s17, 1
      %p77 = scmp.ne.s32.totalorder %s72, %s74
      %p78 = scmp.eq.s32.totalorder %s17, 0
      %p79 = por %p77, %p78
      %p80 = scmp.ne.s32.totalorder %s72, %s74
      %p81 = scmp.eq.s32.totalorder %s22, 1
      %p82 = por %p80, %p81
      %p83 = scmp.ne.s32.totalorder %s74, %s75
      %p84 = scmp.eq.s32.totalorder %s22, 0
      %p85 = por %p83, %p84
      %p86 = scmp.ne.s32.totalorder %s74, %s75
      %p87 = scmp.eq.s32.totalorder %s23, 1
      %p88 = por %p86, %p87
      %p90 = scmp.ne.s32.totalorder %s75, %s89
      %p91 = scmp.eq.s32.totalorder %s23, 0
      %p92 = por %p90, %p91
      %s94 = sadd.s32 %s93, 1
      %p97 = scmp.eq.s32.totalorder %s17, 1
      %p98 = scmp.ne.s32.totalorder %s93, %s95
      %p99 = scmp.eq.s32.totalorder %s17, 0
      %p100 = por %p98, %p99
      %p101 = scmp.ne.s32.totalorder %s93, %s95
      %p102 = scmp.eq.s32.totalorder %s22, 1
      %p103 = por %p101, %p102
      %p104 = scmp.ne.s32.totalorder %s95, %s96
      %p105 = scmp.eq.s32.totalorder %s22, 0
      %p106 = por %p104, %p105
      %p107 = scmp.ne.s32.totalorder %s95, %s96
      %p108 = scmp.eq.s32.totalorder %s23, 1
      %p109 = por %p107, %p108
      %p111 = scmp.ne.s32.totalorder %s96, %s110
      %p112 = scmp.eq.s32.totalorder %s23, 0
      %p113 = por %p111, %p112
      %s115 = sadd.s32 %s114, 1
      %p118 = scmp.eq.s32.totalorder %s17, 1
      %p119 = scmp.ne.s32.totalorder %s114, %s116
      %p120 = scmp.eq.s32.totalorder %s17, 0
      %p121 = por %p119, %p120
      %p122 = scmp.ne.s32.totalorder %s114, %s116
      %p123 = scmp.eq.s32.totalorder %s22, 1
      %p124 = por %p122, %p123
      %p125 = scmp.ne.s32.totalorder %s116, %s117
      %p126 = scmp.eq.s32.totalorder %s22, 0
      %p127 = por %p125, %p126
      %p128 = scmp.ne.s32.totalorder %s116, %s117
      %p129 = scmp.eq.s32.totalorder %s23, 1
      %p130 = por %p128, %p129
      %p132 = scmp.ne.s32.totalorder %s117, %s131
      %p133 = scmp.eq.s32.totalorder %s23, 0
      %p134 = por %p132, %p133
      %s136 = sadd.s32 %s135, 1
      %p139 = scmp.eq.s32.totalorder %s17, 1
      %p140 = scmp.ne.s32.totalorder %s135, %s137
      %p141 = scmp.eq.s32.totalorder %s17, 0
      %p142 = por %p140, %p141
      %p143 = scmp.ne.s32.totalorder %s135, %s137
      %p144 = scmp.eq.s32.totalorder %s22, 1
      %p145 = por %p143, %p144
      %p146 = scmp.ne.s32.totalorder %s137, %s138
      %p147 = scmp.eq.s32.totalorder %s22, 0
      %p148 = por %p146, %p147
      %p149 = scmp.ne.s32.totalorder %s137, %s138
      %p150 = scmp.eq.s32.totalorder %s23, 1
      %p151 = por %p149, %p150
      %p153 = scmp.ne.s32.totalorder %s138, %s152
      %p154 = scmp.eq.s32.totalorder %s23, 0
      %p155 = por %p153, %p154
      %s157 = sadd.s32 %s156, 1
      %p160 = scmp.eq.s32.totalorder %s17, 1
      %p161 = scmp.ne.s32.totalorder %s156, %s158
      %p162 = scmp.eq.s32.totalorder %s17, 0
      %p163 = por %p161, %p162
      %p164 = scmp.ne.s32.totalorder %s156, %s158
      %p165 = scmp.eq.s32.totalorder %s22, 1
      %p166 = por %p164, %p165
      %p167 = scmp.ne.s32.totalorder %s158, %s159
      %p168 = scmp.eq.s32.totalorder %s22, 0
      %p169 = por %p167, %p168
      %p170 = scmp.ne.s32.totalorder %s158, %s159
      %p171 = scmp.eq.s32.totalorder %s23, 1
      %p172 = por %p170, %p171
      %p174 = scmp.ne.s32.totalorder %s159, %s173
      %p175 = scmp.eq.s32.totalorder %s23, 0
      %p176 = por %p174, %p175
      %s178 = sadd.s32 %s177, 1
      %p181 = scmp.eq.s32.totalorder %s17, 1
      %p182 = scmp.ne.s32.totalorder %s177, %s179
      %p183 = scmp.eq.s32.totalorder %s17, 0
      %p184 = por %p182, %p183
      %p185 = scmp.ne.s32.totalorder %s177, %s179
      %p186 = scmp.eq.s32.totalorder %s22, 1
      %p187 = por %p185, %p186
      %p188 = scmp.ne.s32.totalorder %s179, %s180
      %p189 = scmp.eq.s32.totalorder %s22, 0
      %p190 = por %p188, %p189
      %p191 = scmp.ne.s32.totalorder %s179, %s180
      %p192 = scmp.eq.s32.totalorder %s23, 1
      %p193 = por %p191, %p192
      %p195 = scmp.ne.s32.totalorder %s180, %s194
      %p196 = scmp.eq.s32.totalorder %s23, 0
      %p197 = por %p195, %p196
      %s198 = ssub.s32 %s17, %s24
      %p199 = scmp.eq.s32.totalorder %s198, 0
      %s201 = sadd.s32 %s200, 1
      %s202 = scalar_select %p199, %s200, %s201
      %p205 = pneg %p199
      %p206 = scmp.eq.s32.totalorder %s17, 1
      %p207 = por %p205, %p206
      %p208 = scmp.ne.s32.totalorder %s200, %s203
      %p209 = scmp.eq.s32.totalorder %s17, 0
      %p210 = por %p208, %p209
      %p211 = scmp.ne.s32.totalorder %s200, %s203
      %p212 = scmp.eq.s32.totalorder %s22, 1
      %p213 = por %p211, %p212
      %p214 = scmp.ne.s32.totalorder %s203, %s204
      %p215 = scmp.eq.s32.totalorder %s22, 0
      %p216 = por %p214, %p215
      %p217 = scmp.ne.s32.totalorder %s203, %s204
      %p218 = scmp.eq.s32.totalorder %s23, 1
      %p219 = por %p217, %p218
      %p221 = scmp.ne.s32.totalorder %s204, %s220
      %p222 = scmp.eq.s32.totalorder %s23, 0
      %p223 = por %p221, %p222
      %p224 = scmp.le.s32.totalorder 1, %s17
      %p225 = scmp.lt.s32.totalorder %s17, 3
      %p226 = pnand %p224, %p225
      %p227 = pneg %p226
      // Predicated region
      $region9: #{cext_forward.1} parent=5 // pred_check
        _
      $region10: #{cext_forward.1} parent=5 // pred_check_branch
        %229 = sbr.rel (%p226) target = $region12
      $region11: #{cext_forward.1} parent=5 // pred_region
        %s230 = ssub.s32 %s17, 1
        // Predicated region
        $region13: #{cext_forward.1} parent=11 // pred_check
          %p231 = pneg %p64
        $region14: #{cext_forward.1} parent=11 // pred_check_branch
          %233 = sbr.rel (%p231) target = $region16
        $region15: #{cext_forward.1} parent=11 // pred_region
          _
        $region16: #{cext_forward.1} parent=11 // pred_fallthru
          _
        // Predicated region
        $region17: #{cext_forward.1} parent=11 // pred_check
          %p234 = pneg %p85
        $region18: #{cext_forward.1} parent=11 // pred_check_branch
          %236 = sbr.rel (%p234) target = $region20
        $region19: #{cext_forward.1} parent=11 // pred_region
          _
        $region20: #{cext_forward.1} parent=11 // pred_fallthru
          _
        // Predicated region
        $region21: #{cext_forward.1} parent=11 // pred_check
          %p237 = pneg %p106
        $region22: #{cext_forward.1} parent=11 // pred_check_branch
          %239 = sbr.rel (%p237) target = $region24
        $region23: #{cext_forward.1} parent=11 // pred_region
          _
        $region24: #{cext_forward.1} parent=11 // pred_fallthru
          _
        // Predicated region
        $region25: #{cext_forward.1} parent=11 // pred_check
          %p240 = pneg %p127
        $region26: #{cext_forward.1} parent=11 // pred_check_branch
          %242 = sbr.rel (%p240) target = $region28
        $region27: #{cext_forward.1} parent=11 // pred_region
          _
        $region28: #{cext_forward.1} parent=11 // pred_fallthru
          _
        // Predicated region
        $region29: #{cext_forward.1} parent=11 // pred_check
          %p243 = pneg %p148
        $region30: #{cext_forward.1} parent=11 // pred_check_branch
          %245 = sbr.rel (%p243) target = $region32
        $region31: #{cext_forward.1} parent=11 // pred_region
          _
        $region32: #{cext_forward.1} parent=11 // pred_fallthru
          _
        // Predicated region
        $region33: #{cext_forward.1} parent=11 // pred_check
          %p246 = pneg %p169
        $region34: #{cext_forward.1} parent=11 // pred_check_branch
          %248 = sbr.rel (%p246) target = $region36
        $region35: #{cext_forward.1} parent=11 // pred_region
          _
        $region36: #{cext_forward.1} parent=11 // pred_fallthru
          _
        // Predicated region
        $region37: #{cext_forward.1} parent=11 // pred_check
          %p249 = pneg %p190
        $region38: #{cext_forward.1} parent=11 // pred_check_branch
          %251 = sbr.rel (%p249) target = $region40
        $region39: #{cext_forward.1} parent=11 // pred_region
          _
        $region40: #{cext_forward.1} parent=11 // pred_fallthru
          _
      $region12: #{cext_forward.1} parent=5 // pred_fallthru
        _
      %p252 = scmp.lt.s32.totalorder %s17, 2
      // Predicated region
      $region41: #{cext_forward.1} parent=5 // pred_check
        %p253 = pneg %p252
      $region42: #{cext_forward.1} parent=5 // pred_check_branch
        %255 = sbr.rel (%p253) target = $region44
      $region43: #{cext_forward.1} parent=5 // pred_region
        // Predicated region
        $region45: #{cext_forward.1} parent=43 // pred_check
          %p256 = pneg %p37
        $region46: #{cext_forward.1} parent=43 // pred_check_branch
          %258 = sbr.rel (%p256) target = $region48
        $region47: #{cext_forward.1} parent=43 // pred_region
          %p259 = scmp.lt.s32.totalorder %s17, 1
          %s260 = scalar_select %p259, %s17, 1
          %s261 = smul.addr %s260, 8
          %s262 = smul.addr %s261, 4
          %s263 = scalar_lea.vmem %s0, %s262
        $region48: #{cext_forward.1} parent=43 // pred_fallthru
          _
      $region44: #{cext_forward.1} parent=5 // pred_fallthru
        _
      %p264 = scmp.le.s32.totalorder 1, %s17
      %p265 = scmp.lt.s32.totalorder %s17, 3
      %p266 = pnand %p264, %p265
      %p267 = pneg %p266
      // Predicated region
      $region49: #{cext_forward.1} parent=5 // pred_check
        _
      $region50: #{cext_forward.1} parent=5 // pred_check_branch
        %269 = sbr.rel (%p266) target = $region52
      $region51: #{cext_forward.1} parent=5 // pred_region
        %s270 = ssub.s32 %s17, 1
        %p271 = scmp.lt.s32.totalorder %s22, 1
        %s272 = scalar_select %p271, %s22, 1
        %s273 = smul.addr %s272, 8
        %s274 = smul.addr %s273, 4
        %s275 = scalar_lea.vmem %s0, %s274
        %p276 = pneg %p43
        %p277 = pneg %p40
        %p278 = pneg %p64
        %p279 = pneg %p61
        %p280 = pneg %p85
        %p281 = pneg %p82
        %p282 = pneg %p106
        %p283 = pneg %p103
        %p284 = pneg %p127
        %p285 = pneg %p124
        %p286 = pneg %p148
        %p287 = pneg %p145
        %p288 = pneg %p169
        %p289 = pneg %p166
        %p290 = pneg %p190
        %p291 = pneg %p187
        %p292 = pneg %p216
        %p293 = pneg %p213
        %s294 = sand.u32 %s203, 1
        %s295 = scalar_lea.sflag [#allocation3], %s294
        %s296 = sand.u32 %s203, 1
        %s297 = scalar_lea.vmem [#allocation2], %s296
        %p298 = scmp.lt.s32.totalorder %s22, 1
        %s299 = scalar_select %p298, %s22, 1
        %s300 = smul.addr %s299, 8
        %s301 = smul.addr %s300, 4
        %s302 = scalar_lea.vmem %s0, %s301
        %v304 = vld [vmem:[%s302] sm:$0xf]
        %v305 = vld [vmem:[%s302 + $0x4] sm:$0xf]
        %v306 = vld [vmem:[%s302 + $0x8] sm:$0xf]
        %v307 = vld [vmem:[%s302 + $0xc] sm:$0xf]
        %v308 = vld [vmem:[%s302 + $0x10] sm:$0xf]
        %v309 = vld [vmem:[%s302 + $0x14] sm:$0xf]
        %v310 = vld [vmem:[%s302 + $0x18] sm:$0xf]
        %v311 = vld [vmem:[%s302 + $0x1c] sm:$0xf]
        %v312 = vld [vmem:[%s1] sm:$0xf]
        %v313 = vld [vmem:[%s1 + $0x4] sm:$0xf]
        %v314 = vld [vmem:[%s1 + $0x8] sm:$0xf]
        %v315 = vld [vmem:[%s1 + $0xc] sm:$0xf]
        %v316 = vld [vmem:[%s1 + $0x10] sm:$0xf]
        %v317 = vld [vmem:[%s1 + $0x14] sm:$0xf]
        %v318 = vld [vmem:[%s1 + $0x18] sm:$0xf]
        %v319 = vld [vmem:[%s1 + $0x1c] sm:$0xf]
        %v320 = vld [vmem:[%s1 + $0x20] sm:$0xf]
        %v321 = vld [vmem:[%s1 + $0x24] sm:$0xf]
        %v322 = vld [vmem:[%s1 + $0x28] sm:$0xf]
        %v323 = vld [vmem:[%s1 + $0x2c] sm:$0xf]
        %v324 = vld [vmem:[%s1 + $0x30] sm:$0xf]
        %v325 = vld [vmem:[%s1 + $0x34] sm:$0xf]
        %v326 = vld [vmem:[%s1 + $0x38] sm:$0xf]
        %v327 = vld [vmem:[%s1 + $0x3c] sm:$0xf]
        %v328 = vld [vmem:[%s2] sm:$0x1]
        %v330 = vlaneseq
        %v331 = vshrl.u32 %v330, 7
        %v332 = vsub.s32 0, %v331
        %v333 = vrot.slane %v328, %v332
        %v343 = vunpack.c.l.b16 %v304
        %v344 = vunpack.c.l.b16 %v305
        %v345 = vunpack.c.l.b16 %v306
        %v346 = vunpack.c.l.b16 %v307
        %v347 = vunpack.c.l.b16 %v308
        %v348 = vunpack.c.l.b16 %v309
        %v349 = vunpack.c.l.b16 %v310
        %v350 = vunpack.c.l.b16 %v311
        %v351 = vpack.c.b16 %v344, %v343
        %v352 = vpack.c.b16 %v346, %v345
        %v353 = vpack.c.b16 %v348, %v347
        %v354 = vpack.c.b16 %v350, %v349
        %v375 = vunpack.c.l.b16 %v312
        %v376 = vunpack.c.l.b16 %v313
        %v377 = vunpack.c.l.b16 %v314
        %v378 = vunpack.c.l.b16 %v315
        %v379 = vunpack.c.l.b16 %v316
        %v380 = vunpack.c.l.b16 %v317
        %v381 = vunpack.c.l.b16 %v318
        %v382 = vunpack.c.l.b16 %v319
        %v383 = vunpack.c.l.b16 %v320
        %v384 = vunpack.c.l.b16 %v321
        %v385 = vunpack.c.l.b16 %v322
        %v386 = vunpack.c.l.b16 %v323
        %v387 = vunpack.c.l.b16 %v324
        %v388 = vunpack.c.l.b16 %v325
        %v389 = vunpack.c.l.b16 %v326
        %v390 = vunpack.c.l.b16 %v327
        %v391 = vpack.c.b16 %v376, %v375
        %v392 = vpack.c.b16 %v378, %v377
        %v393 = vpack.c.b16 %v380, %v379
        %v394 = vpack.c.b16 %v382, %v381
        %v395 = vpack.c.b16 %v384, %v383
        %v396 = vpack.c.b16 %v386, %v385
        %v397 = vpack.c.b16 %v388, %v387
        %v398 = vpack.c.b16 %v390, %v389
        %407 = vmatprep.subr.bf16.mxu0 0
        %408 = vmatpush1.bf16.msra.mxu0 %v398
        %409 = vmatprep.subr.bf16.mxu0 0
        %410 = vmatpush1.bf16.msra.mxu0 %v397
        %411 = vmatprep.subr.bf16.mxu0 0
        %412 = vmatpush1.bf16.msra.mxu0 %v396
        %413 = vmatprep.subr.bf16.mxu0 0
        %414 = vmatpush1.bf16.msra.mxu0 %v395
        %415 = vmatprep.subr.bf16.mxu0 0
        %416 = vmatpush1.bf16.msra.mxu0 %v394
        %417 = vmatprep.subr.bf16.mxu0 0
        %418 = vmatpush1.bf16.msra.mxu0 %v393
        %419 = vmatprep.subr.bf16.mxu0 0
        %420 = vmatpush1.bf16.msra.mxu0 %v392
        %421 = vmatprep.subr.bf16.mxu0 0
        %422 = vmatpush1.bf16.msra.mxu0 %v391
        %423 = vmatprep.subr.bf16.mxu0 0
        %424 = vmatpush2.bf16.msra.mxu0 0
        %425 = vmatprep.subr.bf16.mxu0 0
        %426 = vmatpush2.bf16.msra.mxu0 0
        %427 = vmatprep.subr.bf16.mxu0 0
        %428 = vmatpush2.bf16.msra.mxu0 0
        %429 = vmatprep.subr.bf16.mxu0 0
        %430 = vmatpush2.bf16.msra.mxu0 0
        %431 = vmatprep.subr.bf16.mxu0 0
        %432 = vmatpush2.bf16.msra.mxu0 0
        %433 = vmatprep.subr.bf16.mxu0 0
        %434 = vmatpush2.bf16.msra.mxu0 0
        %435 = vmatprep.subr.bf16.mxu0 0
        %436 = vmatpush2.bf16.msra.mxu0 0
        %437 = vmatprep.subr.bf16.mxu0 0
        %438 = vmatpush2.bf16.msra.mxu0 0
        %439 = vmatprep.mubr.bf16.mxu0 0
        %440 = vmatmul.mubr.bf16.gmra.mxu0 %v351
        %v441 = vpop.f32.mrf.mxu0
        %v442 = vadd.f32 %v333, %v441
        %v443 = vpop.f32.mrf.mxu0
        %v444 = vpop.f32.mrf.mxu0
        %v445 = vadd.f32 %v333, %v444
        %v446 = vpop.f32.mrf.mxu0
        %447 = vmatprep.mubr.bf16.mxu0 0
        %448 = vmatmul.mubr.bf16.gmra.mxu0 %v352
        %v449 = vpop.f32.mrf.mxu0
        %v450 = vadd.f32 %v333, %v449
        %v451 = vpop.f32.mrf.mxu0
        %v452 = vpop.f32.mrf.mxu0
        %v453 = vadd.f32 %v333, %v452
        %v454 = vpop.f32.mrf.mxu0
        %455 = vmatprep.mubr.bf16.mxu0 0
        %456 = vmatmul.mubr.bf16.gmra.mxu0 %v353
        %v457 = vpop.f32.mrf.mxu0
        %v458 = vadd.f32 %v333, %v457
        %v459 = vpop.f32.mrf.mxu0
        %v460 = vpop.f32.mrf.mxu0
        %v461 = vadd.f32 %v333, %v460
        %v462 = vpop.f32.mrf.mxu0
        %463 = vmatprep.mubr.bf16.mxu0 0
        %464 = vmatmul.mubr.bf16.gmra.mxu0 %v354
        %v465 = vpop.f32.mrf.mxu0
        %v466 = vadd.f32 %v333, %v465
        %v467 = vpop.f32.mrf.mxu0
        %v468 = vpop.f32.mrf.mxu0
        %v469 = vadd.f32 %v333, %v468
        %v470 = vpop.f32.mrf.mxu0
        %471 = vdwg.mxu0
        %v472 = vmax.f32 %v442, 0.0
        %v473 = vmax.f32 %v445, 0.0
        %v474 = vmax.f32 %v450, 0.0
        %v475 = vmax.f32 %v453, 0.0
        %v476 = vmax.f32 %v458, 0.0
        %v477 = vmax.f32 %v461, 0.0
        %v478 = vmax.f32 %v466, 0.0
        %v479 = vmax.f32 %v469, 0.0
        %v480 = vpack.c.bf16 %v473, %v472
        %v481 = vpack.c.bf16 %v475, %v474
        %v482 = vpack.c.bf16 %v477, %v476
        %v483 = vpack.c.bf16 %v479, %v478
        %v484 = vld [vmem:[%s3] sm:$0xf]
        %v485 = vld [vmem:[%s3 + $0x4] sm:$0xf]
        %v486 = vld [vmem:[%s3 + $0x8] sm:$0xf]
        %v487 = vld [vmem:[%s3 + $0xc] sm:$0xf]
        %v488 = vld [vmem:[%s3 + $0x10] sm:$0xf]
        %v489 = vld [vmem:[%s3 + $0x14] sm:$0xf]
        %v490 = vld [vmem:[%s3 + $0x18] sm:$0xf]
        %v491 = vld [vmem:[%s3 + $0x1c] sm:$0xf]
        %v492 = vld [vmem:[%s3 + $0x20] sm:$0xf]
        %v493 = vld [vmem:[%s3 + $0x24] sm:$0xf]
        %v494 = vld [vmem:[%s3 + $0x28] sm:$0xf]
        %v495 = vld [vmem:[%s3 + $0x2c] sm:$0xf]
        %v496 = vld [vmem:[%s3 + $0x30] sm:$0xf]
        %v497 = vld [vmem:[%s3 + $0x34] sm:$0xf]
        %v498 = vld [vmem:[%s3 + $0x38] sm:$0xf]
        %v499 = vld [vmem:[%s3 + $0x3c] sm:$0xf]
        %v500 = vld [vmem:[%s3 + $0x40] sm:$0xf]
        %v501 = vld [vmem:[%s3 + $0x44] sm:$0xf]
        %v520 = vunpack.c.l.b16 %v484
        %v521 = vunpack.c.l.b16 %v485
        %v522 = vunpack.c.l.b16 %v486
        %v523 = vunpack.c.l.b16 %v487
        %v524 = vunpack.c.l.b16 %v488
        %v525 = vunpack.c.l.b16 %v489
        %v526 = vunpack.c.l.b16 %v490
        %v527 = vunpack.c.l.b16 %v491
        %v528 = vunpack.c.l.b16 %v492
        %v529 = vunpack.c.l.b16 %v493
        %v530 = vunpack.c.l.b16 %v494
        %v531 = vunpack.c.l.b16 %v495
        %v532 = vunpack.c.l.b16 %v496
        %v533 = vunpack.c.l.b16 %v497
        %v534 = vunpack.c.l.b16 %v498
        %v535 = vunpack.c.l.b16 %v499
        %v536 = vunpack.c.l.b16 %v500
        %v537 = vunpack.c.l.b16 %v501
        %v538 = vpack.c.b16 %v521, %v520
        %v539 = vpack.c.b16 %v523, %v522
        %v540 = vpack.c.b16 %v525, %v524
        %v541 = vpack.c.b16 %v527, %v526
        %v542 = vpack.c.b16 %v529, %v528
        %v543 = vpack.c.b16 %v531, %v530
        %v544 = vpack.c.b16 %v533, %v532
        %v545 = vpack.c.b16 %v535, %v534
        %v546 = vpack.c.b16 %v537, %v536
        %vm547 = vcmask 523264
        %v549 = vsel %vm547, %v538, 0
        %v552 = vsel %vm547, %v539, 0
        %v555 = vsel %vm547, %v540, 0
        %v558 = vsel %vm547, %v541, 0
        %v561 = vsel %vm547, %v542, 0
        %v564 = vsel %vm547, %v543, 0
        %v567 = vsel %vm547, %v544, 0
        %v570 = vsel %vm547, %v545, 0
        %v573 = vsel %vm547, %v546, 0
        %575 = vmatprep.subr.bf16.mxu0 0
        %576 = vmatpush1.bf16.msra.mxu0 0
        %577 = vmatprep.subr.bf16.mxu0 0
        %578 = vmatpush1.bf16.msra.mxu0 0
        %579 = vmatprep.subr.bf16.mxu0 0
        %580 = vmatpush1.bf16.msra.mxu0 0
        %581 = vmatprep.subr.bf16.mxu0 0
        %582 = vmatpush1.bf16.msra.mxu0 0
        %583 = vmatprep.subr.bf16.mxu0 0
        %584 = vmatpush1.bf16.msra.mxu0 %v483
        %585 = vmatprep.subr.bf16.mxu0 0
        %586 = vmatpush1.bf16.msra.mxu0 %v482
        %587 = vmatprep.subr.bf16.mxu0 0
        %588 = vmatpush1.bf16.msra.mxu0 %v481
        %589 = vmatprep.subr.bf16.mxu0 0
        %590 = vmatpush1.bf16.msra.mxu0 %v480
        %591 = vmatprep.subr.bf16.mxu0 0
        %592 = vmatpush2.bf16.msra.mxu0 0
        %593 = vmatprep.subr.bf16.mxu0 0
        %594 = vmatpush2.bf16.msra.mxu0 0
        %595 = vmatprep.subr.bf16.mxu0 0
        %596 = vmatpush2.bf16.msra.mxu0 0
        %597 = vmatprep.subr.bf16.mxu0 0
        %598 = vmatpush2.bf16.msra.mxu0 0
        %599 = vmatprep.subr.bf16.mxu0 0
        %600 = vmatpush2.bf16.msra.mxu0 0
        %601 = vmatprep.subr.bf16.mxu0 0
        %602 = vmatpush2.bf16.msra.mxu0 0
        %603 = vmatprep.subr.bf16.mxu0 0
        %604 = vmatpush2.bf16.msra.mxu0 0
        %605 = vmatprep.subr.bf16.mxu0 0
        %606 = vmatpush2.bf16.msra.mxu0 0
        %607 = vmatprep.mubr.bf16.mxu0 0
        %608 = vmatmul.mubr.bf16.gmra.mxu0 %v549
        %v609 = vpop.f32.mrf.mxu0
        %v610 = vadd.f32 0.0, %v609
        %v611 = vpop.f32.mrf.mxu0
        %v612 = vpop.f32.mrf.mxu0
        %v613 = vadd.f32 0.0, %v612
        %v614 = vpop.f32.mrf.mxu0
        %615 = vmatprep.mubr.bf16.mxu0 0
        %616 = vmatmul.mubr.bf16.gmra.mxu0 %v552
        %v617 = vpop.f32.mrf.mxu0
        %v618 = vadd.f32 0.0, %v617
        %v619 = vpop.f32.mrf.mxu0
        %v620 = vpop.f32.mrf.mxu0
        %v621 = vadd.f32 0.0, %v620
        %v622 = vpop.f32.mrf.mxu0
        %623 = vmatprep.mubr.bf16.mxu0 0
        %624 = vmatmul.mubr.bf16.gmra.mxu0 %v555
        %v625 = vpop.f32.mrf.mxu0
        %v626 = vadd.f32 0.0, %v625
        %v627 = vpop.f32.mrf.mxu0
        %v628 = vpop.f32.mrf.mxu0
        %v629 = vadd.f32 0.0, %v628
        %v630 = vpop.f32.mrf.mxu0
        %631 = vmatprep.mubr.bf16.mxu0 0
        %632 = vmatmul.mubr.bf16.gmra.mxu0 %v558
        %v633 = vpop.f32.mrf.mxu0
        %v634 = vadd.f32 0.0, %v633
        %v635 = vpop.f32.mrf.mxu0
        %v636 = vpop.f32.mrf.mxu0
        %v637 = vadd.f32 0.0, %v636
        %v638 = vpop.f32.mrf.mxu0
        %639 = vmatprep.mubr.bf16.mxu0 0
        %640 = vmatmul.mubr.bf16.gmra.mxu0 %v561
        %v641 = vpop.f32.mrf.mxu0
        %v642 = vadd.f32 0.0, %v641
        %v643 = vpop.f32.mrf.mxu0
        %v644 = vpop.f32.mrf.mxu0
        %v645 = vadd.f32 0.0, %v644
        %v646 = vpop.f32.mrf.mxu0
        %647 = vmatprep.mubr.bf16.mxu0 0
        %648 = vmatmul.mubr.bf16.gmra.mxu0 %v564
        %v649 = vpop.f32.mrf.mxu0
        %v650 = vadd.f32 0.0, %v649
        %v651 = vpop.f32.mrf.mxu0
        %v652 = vpop.f32.mrf.mxu0
        %v653 = vadd.f32 0.0, %v652
        %v654 = vpop.f32.mrf.mxu0
        %655 = vmatprep.mubr.bf16.mxu0 0
        %656 = vmatmul.mubr.bf16.gmra.mxu0 %v567
        %v657 = vpop.f32.mrf.mxu0
        %v658 = vadd.f32 0.0, %v657
        %v659 = vpop.f32.mrf.mxu0
        %v660 = vpop.f32.mrf.mxu0
        %v661 = vadd.f32 0.0, %v660
        %v662 = vpop.f32.mrf.mxu0
        %663 = vmatprep.mubr.bf16.mxu0 0
        %664 = vmatmul.mubr.bf16.gmra.mxu0 %v570
        %v665 = vpop.f32.mrf.mxu0
        %v666 = vadd.f32 0.0, %v665
        %v667 = vpop.f32.mrf.mxu0
        %v668 = vpop.f32.mrf.mxu0
        %v669 = vadd.f32 0.0, %v668
        %v670 = vpop.f32.mrf.mxu0
        %671 = vmatprep.mubr.bf16.mxu0 0
        %672 = vmatmul.mubr.bf16.gmra.mxu0 %v573
        %v673 = vpop.f32.mrf.mxu0
        %v674 = vadd.f32 0.0, %v673
        %v675 = vpop.f32.mrf.mxu0
        %v676 = vpop.f32.mrf.mxu0
        %v677 = vadd.f32 0.0, %v676
        %v678 = vpop.f32.mrf.mxu0
        %679 = vdwg.mxu0
        %v680 = vpack.c.bf16 %v613, %v610
        %v681 = vld [vmem:[%s4] sm:$0xf]
        %v682 = vld [vmem:[%s4 + $0x4] sm:$0xf]
        %v683 = vld [vmem:[%s4 + $0x8] sm:$0xf]
        %v684 = vld [vmem:[%s4 + $0xc] sm:$0xf]
        %v685 = vpack.c.bf16 %v621, %v618
        %s686 = scalar_lea.vmem %s4, 16
        %v687 = vld [vmem:[%s686] sm:$0xf]
        %v688 = vld [vmem:[%s686 + $0x4] sm:$0xf]
        %v689 = vld [vmem:[%s686 + $0x8] sm:$0xf]
        %v690 = vld [vmem:[%s686 + $0xc] sm:$0xf]
        %v695 = vunpack.c.l.b16 %v687
        %v696 = vunpack.c.l.b16 %v688
        %v697 = vunpack.c.l.b16 %v689
        %v698 = vunpack.c.l.b16 %v690
        %v699 = vpack.c.b16 %v696, %v695
        %v700 = vpack.c.b16 %v698, %v697
        %vm703 = vcmask 261120
        %v705 = vsel %vm703, %v685, 0
        %707 = vmatprep.subr.bf16.mxu0 0
        %708 = vmatpush1.bf16.msra.mxu0 0
        %709 = vmatprep.subr.bf16.mxu0 0
        %710 = vmatpush1.bf16.msra.mxu0 0
        %711 = vmatprep.subr.bf16.mxu0 0
        %712 = vmatpush1.bf16.msra.mxu0 0
        %713 = vmatprep.subr.bf16.mxu0 0
        %714 = vmatpush1.bf16.msra.mxu0 0
        %715 = vmatprep.subr.bf16.mxu0 0
        %716 = vmatpush1.bf16.msra.mxu0 0
        %717 = vmatprep.subr.bf16.mxu0 0
        %718 = vmatpush1.bf16.msra.mxu0 0
        %719 = vmatprep.subr.bf16.mxu0 0
        %720 = vmatpush1.bf16.msra.mxu0 %v700
        %721 = vmatprep.subr.bf16.mxu0 0
        %722 = vmatpush1.bf16.msra.mxu0 %v699
        %723 = vmatprep.subr.bf16.mxu0 0
        %724 = vmatpush2.bf16.msra.mxu0 0
        %725 = vmatprep.subr.bf16.mxu0 0
        %726 = vmatpush2.bf16.msra.mxu0 0
        %727 = vmatprep.subr.bf16.mxu0 0
        %728 = vmatpush2.bf16.msra.mxu0 0
        %729 = vmatprep.subr.bf16.mxu0 0
        %730 = vmatpush2.bf16.msra.mxu0 0
        %731 = vmatprep.subr.bf16.mxu0 0
        %732 = vmatpush2.bf16.msra.mxu0 0
        %733 = vmatprep.subr.bf16.mxu0 0
        %734 = vmatpush2.bf16.msra.mxu0 0
        %735 = vmatprep.subr.bf16.mxu0 0
        %736 = vmatpush2.bf16.msra.mxu0 0
        %737 = vmatprep.subr.bf16.mxu0 0
        %738 = vmatpush2.bf16.msra.mxu0 0
        %739 = vmatprep.mubr.bf16.mxu0 0
        %740 = vmatmul.mubr.bf16.gmra.mxu0 %v705
        %v741 = vpop.f32.mrf.mxu0
        %v742 = vadd.f32 0.0, %v741
        %v743 = vpop.f32.mrf.mxu0
        %v744 = vpop.f32.mrf.mxu0
        %v745 = vadd.f32 0.0, %v744
        %v746 = vpop.f32.mrf.mxu0
        %747 = vdwg.mxu0
        %v752 = vunpack.c.l.b16 %v681
        %v753 = vunpack.c.l.b16 %v682
        %v754 = vunpack.c.l.b16 %v683
        %v755 = vunpack.c.l.b16 %v684
        %v756 = vpack.c.b16 %v753, %v752
        %v757 = vpack.c.b16 %v755, %v754
        %v761 = vsel %vm703, %v680, 0
        %763 = vmatprep.subr.bf16.mxu0 0
        %764 = vmatpush1.bf16.msra.mxu0 0
        %765 = vmatprep.subr.bf16.mxu0 0
        %766 = vmatpush1.bf16.msra.mxu0 0
        %767 = vmatprep.subr.bf16.mxu0 0
        %768 = vmatpush1.bf16.msra.mxu0 0
        %769 = vmatprep.subr.bf16.mxu0 0
        %770 = vmatpush1.bf16.msra.mxu0 0
        %771 = vmatprep.subr.bf16.mxu0 0
        %772 = vmatpush1.bf16.msra.mxu0 0
        %773 = vmatprep.subr.bf16.mxu0 0
        %774 = vmatpush1.bf16.msra.mxu0 0
        %775 = vmatprep.subr.bf16.mxu0 0
        %776 = vmatpush1.bf16.msra.mxu0 %v757
        %777 = vmatprep.subr.bf16.mxu0 0
        %778 = vmatpush1.bf16.msra.mxu0 %v756
        %779 = vmatprep.subr.bf16.mxu0 0
        %780 = vmatpush2.bf16.msra.mxu0 0
        %781 = vmatprep.subr.bf16.mxu0 0
        %782 = vmatpush2.bf16.msra.mxu0 0
        %783 = vmatprep.subr.bf16.mxu0 0
        %784 = vmatpush2.bf16.msra.mxu0 0
        %785 = vmatprep.subr.bf16.mxu0 0
        %786 = vmatpush2.bf16.msra.mxu0 0
        %787 = vmatprep.subr.bf16.mxu0 0
        %788 = vmatpush2.bf16.msra.mxu0 0
        %789 = vmatprep.subr.bf16.mxu0 0
        %790 = vmatpush2.bf16.msra.mxu0 0
        %791 = vmatprep.subr.bf16.mxu0 0
        %792 = vmatpush2.bf16.msra.mxu0 0
        %793 = vmatprep.subr.bf16.mxu0 0
        %794 = vmatpush2.bf16.msra.mxu0 0
        %795 = vmatprep.mubr.bf16.mxu0 0
        %796 = vmatmul.mubr.bf16.gmra.mxu0 %v761
        %v797 = vpop.f32.mrf.mxu0
        %v798 = vadd.f32 %v742, %v797
        %v799 = vpop.f32.mrf.mxu0
        %v800 = vpop.f32.mrf.mxu0
        %v801 = vadd.f32 %v745, %v800
        %v802 = vpop.f32.mrf.mxu0
        %803 = vdwg.mxu0
        %v804 = vpack.c.bf16 %v629, %v626
        %s805 = scalar_lea.vmem %s4, 32
        %v806 = vld [vmem:[%s805] sm:$0xf]
        %v807 = vld [vmem:[%s805 + $0x4] sm:$0xf]
        %v808 = vld [vmem:[%s805 + $0x8] sm:$0xf]
        %v809 = vld [vmem:[%s805 + $0xc] sm:$0xf]
        %v814 = vunpack.c.l.b16 %v806
        %v815 = vunpack.c.l.b16 %v807
        %v816 = vunpack.c.l.b16 %v808
        %v817 = vunpack.c.l.b16 %v809
        %v818 = vpack.c.b16 %v815, %v814
        %v819 = vpack.c.b16 %v817, %v816
        %v823 = vsel %vm703, %v804, 0
        %825 = vmatprep.subr.bf16.mxu0 0
        %826 = vmatpush1.bf16.msra.mxu0 0
        %827 = vmatprep.subr.bf16.mxu0 0
        %828 = vmatpush1.bf16.msra.mxu0 0
        %829 = vmatprep.subr.bf16.mxu0 0
        %830 = vmatpush1.bf16.msra.mxu0 0
        %831 = vmatprep.subr.bf16.mxu0 0
        %832 = vmatpush1.bf16.msra.mxu0 0
        %833 = vmatprep.subr.bf16.mxu0 0
        %834 = vmatpush1.bf16.msra.mxu0 0
        %835 = vmatprep.subr.bf16.mxu0 0
        %836 = vmatpush1.bf16.msra.mxu0 0
        %837 = vmatprep.subr.bf16.mxu0 0
        %838 = vmatpush1.bf16.msra.mxu0 %v819
        %839 = vmatprep.subr.bf16.mxu0 0
        %840 = vmatpush1.bf16.msra.mxu0 %v818
        %841 = vmatprep.subr.bf16.mxu0 0
        %842 = vmatpush2.bf16.msra.mxu0 0
        %843 = vmatprep.subr.bf16.mxu0 0
        %844 = vmatpush2.bf16.msra.mxu0 0
        %845 = vmatprep.subr.bf16.mxu0 0
        %846 = vmatpush2.bf16.msra.mxu0 0
        %847 = vmatprep.subr.bf16.mxu0 0
        %848 = vmatpush2.bf16.msra.mxu0 0
        %849 = vmatprep.subr.bf16.mxu0 0
        %850 = vmatpush2.bf16.msra.mxu0 0
        %851 = vmatprep.subr.bf16.mxu0 0
        %852 = vmatpush2.bf16.msra.mxu0 0
        %853 = vmatprep.subr.bf16.mxu0 0
        %854 = vmatpush2.bf16.msra.mxu0 0
        %855 = vmatprep.subr.bf16.mxu0 0
        %856 = vmatpush2.bf16.msra.mxu0 0
        %857 = vmatprep.mubr.bf16.mxu0 0
        %858 = vmatmul.mubr.bf16.gmra.mxu0 %v823
        %v859 = vpop.f32.mrf.mxu0
        %v860 = vadd.f32 0.0, %v859
        %v861 = vpop.f32.mrf.mxu0
        %v862 = vpop.f32.mrf.mxu0
        %v863 = vadd.f32 0.0, %v862
        %v864 = vpop.f32.mrf.mxu0
        %865 = vdwg.mxu0
        %v866 = vadd.f32 %v798, %v860
        %v867 = vadd.f32 %v801, %v863
        %v868 = vpack.c.bf16 %v637, %v634
        %s869 = scalar_lea.vmem %s4, 48
        %v870 = vld [vmem:[%s869] sm:$0xf]
        %v871 = vld [vmem:[%s869 + $0x4] sm:$0xf]
        %v872 = vld [vmem:[%s869 + $0x8] sm:$0xf]
        %v873 = vld [vmem:[%s869 + $0xc] sm:$0xf]
        %v878 = vunpack.c.l.b16 %v870
        %v879 = vunpack.c.l.b16 %v871
        %v880 = vunpack.c.l.b16 %v872
        %v881 = vunpack.c.l.b16 %v873
        %v882 = vpack.c.b16 %v879, %v878
        %v883 = vpack.c.b16 %v881, %v880
        %v887 = vsel %vm703, %v868, 0
        %889 = vmatprep.subr.bf16.mxu0 0
        %890 = vmatpush1.bf16.msra.mxu0 0
        %891 = vmatprep.subr.bf16.mxu0 0
        %892 = vmatpush1.bf16.msra.mxu0 0
        %893 = vmatprep.subr.bf16.mxu0 0
        %894 = vmatpush1.bf16.msra.mxu0 0
        %895 = vmatprep.subr.bf16.mxu0 0
        %896 = vmatpush1.bf16.msra.mxu0 0
        %897 = vmatprep.subr.bf16.mxu0 0
        %898 = vmatpush1.bf16.msra.mxu0 0
        %899 = vmatprep.subr.bf16.mxu0 0
        %900 = vmatpush1.bf16.msra.mxu0 0
        %901 = vmatprep.subr.bf16.mxu0 0
        %902 = vmatpush1.bf16.msra.mxu0 %v883
        %903 = vmatprep.subr.bf16.mxu0 0
        %904 = vmatpush1.bf16.msra.mxu0 %v882
        %905 = vmatprep.subr.bf16.mxu0 0
        %906 = vmatpush2.bf16.msra.mxu0 0
        %907 = vmatprep.subr.bf16.mxu0 0
        %908 = vmatpush2.bf16.msra.mxu0 0
        %909 = vmatprep.subr.bf16.mxu0 0
        %910 = vmatpush2.bf16.msra.mxu0 0
        %911 = vmatprep.subr.bf16.mxu0 0
        %912 = vmatpush2.bf16.msra.mxu0 0
        %913 = vmatprep.subr.bf16.mxu0 0
        %914 = vmatpush2.bf16.msra.mxu0 0
        %915 = vmatprep.subr.bf16.mxu0 0
        %916 = vmatpush2.bf16.msra.mxu0 0
        %917 = vmatprep.subr.bf16.mxu0 0
        %918 = vmatpush2.bf16.msra.mxu0 0
        %919 = vmatprep.subr.bf16.mxu0 0
        %920 = vmatpush2.bf16.msra.mxu0 0
        %921 = vmatprep.mubr.bf16.mxu0 0
        %922 = vmatmul.mubr.bf16.gmra.mxu0 %v887
        %v923 = vpop.f32.mrf.mxu0
        %v924 = vadd.f32 0.0, %v923
        %v925 = vpop.f32.mrf.mxu0
        %v926 = vpop.f32.mrf.mxu0
        %v927 = vadd.f32 0.0, %v926
        %v928 = vpop.f32.mrf.mxu0
        %929 = vdwg.mxu0
        %v930 = vadd.f32 %v866, %v924
        %v931 = vadd.f32 %v867, %v927
        %v932 = vpack.c.bf16 %v645, %v642
        %s933 = scalar_lea.vmem %s4, 64
        %v934 = vld [vmem:[%s933] sm:$0xf]
        %v935 = vld [vmem:[%s933 + $0x4] sm:$0xf]
        %v936 = vld [vmem:[%s933 + $0x8] sm:$0xf]
        %v937 = vld [vmem:[%s933 + $0xc] sm:$0xf]
        %v942 = vunpack.c.l.b16 %v934
        %v943 = vunpack.c.l.b16 %v935
        %v944 = vunpack.c.l.b16 %v936
        %v945 = vunpack.c.l.b16 %v937
        %v946 = vpack.c.b16 %v943, %v942
        %v947 = vpack.c.b16 %v945, %v944
        %v951 = vsel %vm703, %v932, 0
        %953 = vmatprep.subr.bf16.mxu0 0
        %954 = vmatpush1.bf16.msra.mxu0 0
        %955 = vmatprep.subr.bf16.mxu0 0
        %956 = vmatpush1.bf16.msra.mxu0 0
        %957 = vmatprep.subr.bf16.mxu0 0
        %958 = vmatpush1.bf16.msra.mxu0 0
        %959 = vmatprep.subr.bf16.mxu0 0
        %960 = vmatpush1.bf16.msra.mxu0 0
        %961 = vmatprep.subr.bf16.mxu0 0
        %962 = vmatpush1.bf16.msra.mxu0 0
        %963 = vmatprep.subr.bf16.mxu0 0
        %964 = vmatpush1.bf16.msra.mxu0 0
        %965 = vmatprep.subr.bf16.mxu0 0
        %966 = vmatpush1.bf16.msra.mxu0 %v947
        %967 = vmatprep.subr.bf16.mxu0 0
        %968 = vmatpush1.bf16.msra.mxu0 %v946
        %969 = vmatprep.subr.bf16.mxu0 0
        %970 = vmatpush2.bf16.msra.mxu0 0
        %971 = vmatprep.subr.bf16.mxu0 0
        %972 = vmatpush2.bf16.msra.mxu0 0
        %973 = vmatprep.subr.bf16.mxu0 0
        %974 = vmatpush2.bf16.msra.mxu0 0
        %975 = vmatprep.subr.bf16.mxu0 0
        %976 = vmatpush2.bf16.msra.mxu0 0
        %977 = vmatprep.subr.bf16.mxu0 0
        %978 = vmatpush2.bf16.msra.mxu0 0
        %979 = vmatprep.subr.bf16.mxu0 0
        %980 = vmatpush2.bf16.msra.mxu0 0
        %981 = vmatprep.subr.bf16.mxu0 0
        %982 = vmatpush2.bf16.msra.mxu0 0
        %983 = vmatprep.subr.bf16.mxu0 0
        %984 = vmatpush2.bf16.msra.mxu0 0
        %985 = vmatprep.mubr.bf16.mxu0 0
        %986 = vmatmul.mubr.bf16.gmra.mxu0 %v951
        %v987 = vpop.f32.mrf.mxu0
        %v988 = vadd.f32 0.0, %v987
        %v989 = vpop.f32.mrf.mxu0
        %v990 = vpop.f32.mrf.mxu0
        %v991 = vadd.f32 0.0, %v990
        %v992 = vpop.f32.mrf.mxu0
        %993 = vdwg.mxu0
        %v994 = vadd.f32 %v930, %v988
        %v995 = vadd.f32 %v931, %v991
        %v996 = vpack.c.bf16 %v653, %v650
        %s997 = scalar_lea.vmem %s4, 80
        %v998 = vld [vmem:[%s997] sm:$0xf]
        %v999 = vld [vmem:[%s997 + $0x4] sm:$0xf]
        %v1000 = vld [vmem:[%s997 + $0x8] sm:$0xf]
        %v1001 = vld [vmem:[%s997 + $0xc] sm:$0xf]
        %v1006 = vunpack.c.l.b16 %v998
        %v1007 = vunpack.c.l.b16 %v999
        %v1008 = vunpack.c.l.b16 %v1000
        %v1009 = vunpack.c.l.b16 %v1001
        %v1010 = vpack.c.b16 %v1007, %v1006
        %v1011 = vpack.c.b16 %v1009, %v1008
        %v1015 = vsel %vm703, %v996, 0
        %1017 = vmatprep.subr.bf16.mxu0 0
        %1018 = vmatpush1.bf16.msra.mxu0 0
        %1019 = vmatprep.subr.bf16.mxu0 0
        %1020 = vmatpush1.bf16.msra.mxu0 0
        %1021 = vmatprep.subr.bf16.mxu0 0
        %1022 = vmatpush1.bf16.msra.mxu0 0
        %1023 = vmatprep.subr.bf16.mxu0 0
        %1024 = vmatpush1.bf16.msra.mxu0 0
        %1025 = vmatprep.subr.bf16.mxu0 0
        %1026 = vmatpush1.bf16.msra.mxu0 0
        %1027 = vmatprep.subr.bf16.mxu0 0
        %1028 = vmatpush1.bf16.msra.mxu0 0
        %1029 = vmatprep.subr.bf16.mxu0 0
        %1030 = vmatpush1.bf16.msra.mxu0 %v1011
        %1031 = vmatprep.subr.bf16.mxu0 0
        %1032 = vmatpush1.bf16.msra.mxu0 %v1010
        %1033 = vmatprep.subr.bf16.mxu0 0
        %1034 = vmatpush2.bf16.msra.mxu0 0
        %1035 = vmatprep.subr.bf16.mxu0 0
        %1036 = vmatpush2.bf16.msra.mxu0 0
        %1037 = vmatprep.subr.bf16.mxu0 0
        %1038 = vmatpush2.bf16.msra.mxu0 0
        %1039 = vmatprep.subr.bf16.mxu0 0
        %1040 = vmatpush2.bf16.msra.mxu0 0
        %1041 = vmatprep.subr.bf16.mxu0 0
        %1042 = vmatpush2.bf16.msra.mxu0 0
        %1043 = vmatprep.subr.bf16.mxu0 0
        %1044 = vmatpush2.bf16.msra.mxu0 0
        %1045 = vmatprep.subr.bf16.mxu0 0
        %1046 = vmatpush2.bf16.msra.mxu0 0
        %1047 = vmatprep.subr.bf16.mxu0 0
        %1048 = vmatpush2.bf16.msra.mxu0 0
        %1049 = vmatprep.mubr.bf16.mxu0 0
        %1050 = vmatmul.mubr.bf16.gmra.mxu0 %v1015
        %v1051 = vpop.f32.mrf.mxu0
        %v1052 = vadd.f32 0.0, %v1051
        %v1053 = vpop.f32.mrf.mxu0
        %v1054 = vpop.f32.mrf.mxu0
        %v1055 = vadd.f32 0.0, %v1054
        %v1056 = vpop.f32.mrf.mxu0
        %1057 = vdwg.mxu0
        %v1058 = vadd.f32 %v994, %v1052
        %v1059 = vadd.f32 %v995, %v1055
        %v1060 = vpack.c.bf16 %v661, %v658
        %s1061 = scalar_lea.vmem %s4, 96
        %v1062 = vld [vmem:[%s1061] sm:$0xf]
        %v1063 = vld [vmem:[%s1061 + $0x4] sm:$0xf]
        %v1064 = vld [vmem:[%s1061 + $0x8] sm:$0xf]
        %v1065 = vld [vmem:[%s1061 + $0xc] sm:$0xf]
        %v1070 = vunpack.c.l.b16 %v1062
        %v1071 = vunpack.c.l.b16 %v1063
        %v1072 = vunpack.c.l.b16 %v1064
        %v1073 = vunpack.c.l.b16 %v1065
        %v1074 = vpack.c.b16 %v1071, %v1070
        %v1075 = vpack.c.b16 %v1073, %v1072
        %v1079 = vsel %vm703, %v1060, 0
        %1081 = vmatprep.subr.bf16.mxu0 0
        %1082 = vmatpush1.bf16.msra.mxu0 0
        %1083 = vmatprep.subr.bf16.mxu0 0
        %1084 = vmatpush1.bf16.msra.mxu0 0
        %1085 = vmatprep.subr.bf16.mxu0 0
        %1086 = vmatpush1.bf16.msra.mxu0 0
        %1087 = vmatprep.subr.bf16.mxu0 0
        %1088 = vmatpush1.bf16.msra.mxu0 0
        %1089 = vmatprep.subr.bf16.mxu0 0
        %1090 = vmatpush1.bf16.msra.mxu0 0
        %1091 = vmatprep.subr.bf16.mxu0 0
        %1092 = vmatpush1.bf16.msra.mxu0 0
        %1093 = vmatprep.subr.bf16.mxu0 0
        %1094 = vmatpush1.bf16.msra.mxu0 %v1075
        %1095 = vmatprep.subr.bf16.mxu0 0
        %1096 = vmatpush1.bf16.msra.mxu0 %v1074
        %1097 = vmatprep.subr.bf16.mxu0 0
        %1098 = vmatpush2.bf16.msra.mxu0 0
        %1099 = vmatprep.subr.bf16.mxu0 0
        %1100 = vmatpush2.bf16.msra.mxu0 0
        %1101 = vmatprep.subr.bf16.mxu0 0
        %1102 = vmatpush2.bf16.msra.mxu0 0
        %1103 = vmatprep.subr.bf16.mxu0 0
        %1104 = vmatpush2.bf16.msra.mxu0 0
        %1105 = vmatprep.subr.bf16.mxu0 0
        %1106 = vmatpush2.bf16.msra.mxu0 0
        %1107 = vmatprep.subr.bf16.mxu0 0
        %1108 = vmatpush2.bf16.msra.mxu0 0
        %1109 = vmatprep.subr.bf16.mxu0 0
        %1110 = vmatpush2.bf16.msra.mxu0 0
        %1111 = vmatprep.subr.bf16.mxu0 0
        %1112 = vmatpush2.bf16.msra.mxu0 0
        %1113 = vmatprep.mubr.bf16.mxu0 0
        %1114 = vmatmul.mubr.bf16.gmra.mxu0 %v1079
        %v1115 = vpop.f32.mrf.mxu0
        %v1116 = vadd.f32 0.0, %v1115
        %v1117 = vpop.f32.mrf.mxu0
        %v1118 = vpop.f32.mrf.mxu0
        %v1119 = vadd.f32 0.0, %v1118
        %v1120 = vpop.f32.mrf.mxu0
        %1121 = vdwg.mxu0
        %v1122 = vadd.f32 %v1058, %v1116
        %v1123 = vadd.f32 %v1059, %v1119
        %v1124 = vpack.c.bf16 %v669, %v666
        %s1125 = scalar_lea.vmem %s4, 112
        %v1126 = vld [vmem:[%s1125] sm:$0xf]
        %v1127 = vld [vmem:[%s1125 + $0x4] sm:$0xf]
        %v1128 = vld [vmem:[%s1125 + $0x8] sm:$0xf]
        %v1129 = vld [vmem:[%s1125 + $0xc] sm:$0xf]
        %v1134 = vunpack.c.l.b16 %v1126
        %v1135 = vunpack.c.l.b16 %v1127
        %v1136 = vunpack.c.l.b16 %v1128
        %v1137 = vunpack.c.l.b16 %v1129
        %v1138 = vpack.c.b16 %v1135, %v1134
        %v1139 = vpack.c.b16 %v1137, %v1136
        %v1143 = vsel %vm703, %v1124, 0
        %1145 = vmatprep.subr.bf16.mxu0 0
        %1146 = vmatpush1.bf16.msra.mxu0 0
        %1147 = vmatprep.subr.bf16.mxu0 0
        %1148 = vmatpush1.bf16.msra.mxu0 0
        %1149 = vmatprep.subr.bf16.mxu0 0
        %1150 = vmatpush1.bf16.msra.mxu0 0
        %1151 = vmatprep.subr.bf16.mxu0 0
        %1152 = vmatpush1.bf16.msra.mxu0 0
        %1153 = vmatprep.subr.bf16.mxu0 0
        %1154 = vmatpush1.bf16.msra.mxu0 0
        %1155 = vmatprep.subr.bf16.mxu0 0
        %1156 = vmatpush1.bf16.msra.mxu0 0
        %1157 = vmatprep.subr.bf16.mxu0 0
        %1158 = vmatpush1.bf16.msra.mxu0 %v1139
        %1159 = vmatprep.subr.bf16.mxu0 0
        %1160 = vmatpush1.bf16.msra.mxu0 %v1138
        %1161 = vmatprep.subr.bf16.mxu0 0
        %1162 = vmatpush2.bf16.msra.mxu0 0
        %1163 = vmatprep.subr.bf16.mxu0 0
        %1164 = vmatpush2.bf16.msra.mxu0 0
        %1165 = vmatprep.subr.bf16.mxu0 0
        %1166 = vmatpush2.bf16.msra.mxu0 0
        %1167 = vmatprep.subr.bf16.mxu0 0
        %1168 = vmatpush2.bf16.msra.mxu0 0
        %1169 = vmatprep.subr.bf16.mxu0 0
        %1170 = vmatpush2.bf16.msra.mxu0 0
        %1171 = vmatprep.subr.bf16.mxu0 0
        %1172 = vmatpush2.bf16.msra.mxu0 0
        %1173 = vmatprep.subr.bf16.mxu0 0
        %1174 = vmatpush2.bf16.msra.mxu0 0
        %1175 = vmatprep.subr.bf16.mxu0 0
        %1176 = vmatpush2.bf16.msra.mxu0 0
        %1177 = vmatprep.mubr.bf16.mxu0 0
        %1178 = vmatmul.mubr.bf16.gmra.mxu0 %v1143
        %v1179 = vpop.f32.mrf.mxu0
        %v1180 = vadd.f32 0.0, %v1179
        %v1181 = vpop.f32.mrf.mxu0
        %v1182 = vpop.f32.mrf.mxu0
        %v1183 = vadd.f32 0.0, %v1182
        %v1184 = vpop.f32.mrf.mxu0
        %1185 = vdwg.mxu0
        %v1186 = vadd.f32 %v1122, %v1180
        %v1187 = vadd.f32 %v1123, %v1183
        %v1188 = vpack.c.bf16 %v677, %v674
        %s1189 = scalar_lea.vmem %s4, 128
        %v1190 = vld [vmem:[%s1189] sm:$0xf]
        %v1191 = vld [vmem:[%s1189 + $0x4] sm:$0xf]
        %v1192 = vld [vmem:[%s1189 + $0x8] sm:$0xf]
        %v1193 = vld [vmem:[%s1189 + $0xc] sm:$0xf]
        %v1198 = vunpack.c.l.b16 %v1190
        %v1199 = vunpack.c.l.b16 %v1191
        %v1200 = vunpack.c.l.b16 %v1192
        %v1201 = vunpack.c.l.b16 %v1193
        %v1202 = vpack.c.b16 %v1199, %v1198
        %v1203 = vpack.c.b16 %v1201, %v1200
        %v1207 = vsel %vm703, %v1188, 0
        %1209 = vmatprep.subr.bf16.mxu0 0
        %1210 = vmatpush1.bf16.msra.mxu0 0
        %1211 = vmatprep.subr.bf16.mxu0 0
        %1212 = vmatpush1.bf16.msra.mxu0 0
        %1213 = vmatprep.subr.bf16.mxu0 0
        %1214 = vmatpush1.bf16.msra.mxu0 0
        %1215 = vmatprep.subr.bf16.mxu0 0
        %1216 = vmatpush1.bf16.msra.mxu0 0
        %1217 = vmatprep.subr.bf16.mxu0 0
        %1218 = vmatpush1.bf16.msra.mxu0 0
        %1219 = vmatprep.subr.bf16.mxu0 0
        %1220 = vmatpush1.bf16.msra.mxu0 0
        %1221 = vmatprep.subr.bf16.mxu0 0
        %1222 = vmatpush1.bf16.msra.mxu0 %v1203
        %1223 = vmatprep.subr.bf16.mxu0 0
        %1224 = vmatpush1.bf16.msra.mxu0 %v1202
        %1225 = vmatprep.subr.bf16.mxu0 0
        %1226 = vmatpush2.bf16.msra.mxu0 0
        %1227 = vmatprep.subr.bf16.mxu0 0
        %1228 = vmatpush2.bf16.msra.mxu0 0
        %1229 = vmatprep.subr.bf16.mxu0 0
        %1230 = vmatpush2.bf16.msra.mxu0 0
        %1231 = vmatprep.subr.bf16.mxu0 0
        %1232 = vmatpush2.bf16.msra.mxu0 0
        %1233 = vmatprep.subr.bf16.mxu0 0
        %1234 = vmatpush2.bf16.msra.mxu0 0
        %1235 = vmatprep.subr.bf16.mxu0 0
        %1236 = vmatpush2.bf16.msra.mxu0 0
        %1237 = vmatprep.subr.bf16.mxu0 0
        %1238 = vmatpush2.bf16.msra.mxu0 0
        %1239 = vmatprep.subr.bf16.mxu0 0
        %1240 = vmatpush2.bf16.msra.mxu0 0
        %1241 = vmatprep.mubr.bf16.mxu0 0
        %1242 = vmatmul.mubr.bf16.gmra.mxu0 %v1207
        %v1243 = vpop.f32.mrf.mxu0
        %v1244 = vadd.f32 0.0, %v1243
        %v1245 = vpop.f32.mrf.mxu0
        %v1246 = vpop.f32.mrf.mxu0
        %v1247 = vadd.f32 0.0, %v1246
        %v1248 = vpop.f32.mrf.mxu0
        %1249 = vdwg.mxu0
        %v1250 = vadd.f32 %v1186, %v1244
        %v1251 = vadd.f32 %v1187, %v1247
        %v1252 = vld [vmem:[%s5] sm:$0x1]
        %v1254 = vlaneseq
        %v1255 = vshrl.u32 %v1254, 7
        %v1256 = vsub.s32 0, %v1255
        %v1257 = vrot.slane %v1252, %v1256
        %v1259 = vadd.f32 %v1250, %v1257
        %v1260 = vadd.f32 %v1251, %v1257
        %v1261 = vmax.f32 %v1259, 0.0
        %v1262 = vmax.f32 %v1260, 0.0
        %v1263 = vld [vmem:[%s6] sm:$0xff]
        %v1264 = vld [vmem:[%s6 + $0x8] sm:$0xff]
        %v1265 = vld [vmem:[%s6 + $0x10] sm:$0xff]
        %v1266 = vld [vmem:[%s6 + $0x18] sm:$0xff]
        %s1267 = scalar_lea.vmem %s6, 32
        %v1268 = vld [vmem:[%s1267] sm:$0xff]
        %v1269 = vld [vmem:[%s1267 + $0x8] sm:$0xff]
        %v1270 = vld [vmem:[%s1267 + $0x10] sm:$0xff]
        %v1271 = vld [vmem:[%s1267 + $0x18] sm:$0xff]
        %v1273 = vrot.slane %v1261, 1
        %v1274 = vsel %vm703, %v1273, 0
        %1276 = vmatprep.subr.mxu0 0.0
        %1277 = vmatpush1.msra.mxu0 0.0
        %1278 = vmatprep.subr.mxu0 0.0
        %1279 = vmatpush1.msra.mxu0 0.0
        %1280 = vmatprep.subr.mxu0 0.0
        %1281 = vmatpush1.msra.mxu0 0.0
        %1282 = vmatprep.subr.mxu0 0.0
        %1283 = vmatpush1.msra.mxu0 0.0
        %1284 = vmatprep.subr.mxu0 0.0
        %1285 = vmatpush1.msra.mxu0 0.0
        %1286 = vmatprep.subr.mxu0 0.0
        %1287 = vmatpush1.msra.mxu0 0.0
        %1288 = vmatprep.subr.mxu0 0.0
        %1289 = vmatpush1.msra.mxu0 0.0
        %1290 = vmatprep.subr.mxu0 0.0
        %1291 = vmatpush1.msra.mxu0 0.0
        %1292 = vmatprep.subr.mxu0 0.0
        %1293 = vmatpush1.msra.mxu0 0.0
        %1294 = vmatprep.subr.mxu0 0.0
        %1295 = vmatpush1.msra.mxu0 0.0
        %1296 = vmatprep.subr.mxu0 0.0
        %1297 = vmatpush1.msra.mxu0 0.0
        %1298 = vmatprep.subr.mxu0 0.0
        %1299 = vmatpush1.msra.mxu0 0.0
        %1300 = vmatprep.subr.mxu0 0.0
        %1301 = vmatpush1.msra.mxu0 %v1271
        %1302 = vmatprep.subr.mxu0 0.0
        %1303 = vmatpush1.msra.mxu0 %v1270
        %1304 = vmatprep.subr.mxu0 0.0
        %1305 = vmatpush1.msra.mxu0 %v1269
        %1306 = vmatprep.subr.mxu0 0.0
        %1307 = vmatpush1.msra.mxu0 %v1268
        %1308 = vmatprep.subr.mxu0 0.0
        %1309 = vmatpush2.msra.mxu0 0.0
        %1310 = vmatprep.subr.mxu0 0.0
        %1311 = vmatpush2.msra.mxu0 0.0
        %1312 = vmatprep.subr.mxu0 0.0
        %1313 = vmatpush2.msra.mxu0 0.0
        %1314 = vmatprep.subr.mxu0 0.0
        %1315 = vmatpush2.msra.mxu0 0.0
        %1316 = vmatprep.subr.mxu0 0.0
        %1317 = vmatpush2.msra.mxu0 0.0
        %1318 = vmatprep.subr.mxu0 0.0
        %1319 = vmatpush2.msra.mxu0 0.0
        %1320 = vmatprep.subr.mxu0 0.0
        %1321 = vmatpush2.msra.mxu0 0.0
        %1322 = vmatprep.subr.mxu0 0.0
        %1323 = vmatpush2.msra.mxu0 0.0
        %1324 = vmatprep.subr.mxu0 0.0
        %1325 = vmatpush2.msra.mxu0 0.0
        %1326 = vmatprep.subr.mxu0 0.0
        %1327 = vmatpush2.msra.mxu0 0.0
        %1328 = vmatprep.subr.mxu0 0.0
        %1329 = vmatpush2.msra.mxu0 0.0
        %1330 = vmatprep.subr.mxu0 0.0
        %1331 = vmatpush2.msra.mxu0 0.0
        %1332 = vmatprep.subr.mxu0 0.0
        %1333 = vmatpush2.msra.mxu0 0.0
        %1334 = vmatprep.subr.mxu0 0.0
        %1335 = vmatpush2.msra.mxu0 0.0
        %1336 = vmatprep.subr.mxu0 0.0
        %1337 = vmatpush2.msra.mxu0 0.0
        %1338 = vmatprep.subr.mxu0 0.0
        %1339 = vmatpush2.msra.mxu0 0.0
        %1340 = vmatprep.mubr.f32.mxu0 0.0
        %1341 = vmatmul.mubr.f32.gmra.mxu0 %v1274
        %v1342 = vpop.f32.mrf.mxu0
        %v1343 = vadd.f32 0.0, %v1342
        %v1344 = vpop.f32.mrf.mxu0
        %1345 = vdwg.mxu0
        %v1346 = vsel %vm703, %v1261, 0
        %1348 = vmatprep.subr.mxu0 0.0
        %1349 = vmatpush1.msra.mxu0 0.0
        %1350 = vmatprep.subr.mxu0 0.0
        %1351 = vmatpush1.msra.mxu0 0.0
        %1352 = vmatprep.subr.mxu0 0.0
        %1353 = vmatpush1.msra.mxu0 0.0
        %1354 = vmatprep.subr.mxu0 0.0
        %1355 = vmatpush1.msra.mxu0 0.0
        %1356 = vmatprep.subr.mxu0 0.0
        %1357 = vmatpush1.msra.mxu0 0.0
        %1358 = vmatprep.subr.mxu0 0.0
        %1359 = vmatpush1.msra.mxu0 0.0
        %1360 = vmatprep.subr.mxu0 0.0
        %1361 = vmatpush1.msra.mxu0 0.0
        %1362 = vmatprep.subr.mxu0 0.0
        %1363 = vmatpush1.msra.mxu0 0.0
        %1364 = vmatprep.subr.mxu0 0.0
        %1365 = vmatpush1.msra.mxu0 0.0
        %1366 = vmatprep.subr.mxu0 0.0
        %1367 = vmatpush1.msra.mxu0 0.0
        %1368 = vmatprep.subr.mxu0 0.0
        %1369 = vmatpush1.msra.mxu0 0.0
        %1370 = vmatprep.subr.mxu0 0.0
        %1371 = vmatpush1.msra.mxu0 0.0
        %1372 = vmatprep.subr.mxu0 0.0
        %1373 = vmatpush1.msra.mxu0 %v1266
        %1374 = vmatprep.subr.mxu0 0.0
        %1375 = vmatpush1.msra.mxu0 %v1265
        %1376 = vmatprep.subr.mxu0 0.0
        %1377 = vmatpush1.msra.mxu0 %v1264
        %1378 = vmatprep.subr.mxu0 0.0
        %1379 = vmatpush1.msra.mxu0 %v1263
        %1380 = vmatprep.subr.mxu0 0.0
        %1381 = vmatpush2.msra.mxu0 0.0
        %1382 = vmatprep.subr.mxu0 0.0
        %1383 = vmatpush2.msra.mxu0 0.0
        %1384 = vmatprep.subr.mxu0 0.0
        %1385 = vmatpush2.msra.mxu0 0.0
        %1386 = vmatprep.subr.mxu0 0.0
        %1387 = vmatpush2.msra.mxu0 0.0
        %1388 = vmatprep.subr.mxu0 0.0
        %1389 = vmatpush2.msra.mxu0 0.0
        %1390 = vmatprep.subr.mxu0 0.0
        %1391 = vmatpush2.msra.mxu0 0.0
        %1392 = vmatprep.subr.mxu0 0.0
        %1393 = vmatpush2.msra.mxu0 0.0
        %1394 = vmatprep.subr.mxu0 0.0
        %1395 = vmatpush2.msra.mxu0 0.0
        %1396 = vmatprep.subr.mxu0 0.0
        %1397 = vmatpush2.msra.mxu0 0.0
        %1398 = vmatprep.subr.mxu0 0.0
        %1399 = vmatpush2.msra.mxu0 0.0
        %1400 = vmatprep.subr.mxu0 0.0
        %1401 = vmatpush2.msra.mxu0 0.0
        %1402 = vmatprep.subr.mxu0 0.0
        %1403 = vmatpush2.msra.mxu0 0.0
        %1404 = vmatprep.subr.mxu0 0.0
        %1405 = vmatpush2.msra.mxu0 0.0
        %1406 = vmatprep.subr.mxu0 0.0
        %1407 = vmatpush2.msra.mxu0 0.0
        %1408 = vmatprep.subr.mxu0 0.0
        %1409 = vmatpush2.msra.mxu0 0.0
        %1410 = vmatprep.subr.mxu0 0.0
        %1411 = vmatpush2.msra.mxu0 0.0
        %1412 = vmatprep.mubr.f32.mxu0 0.0
        %1413 = vmatmul.mubr.f32.gmra.mxu0 %v1346
        %v1414 = vpop.f32.mrf.mxu0
        %v1415 = vadd.f32 %v1343, %v1414
        %v1416 = vpop.f32.mrf.mxu0
        %1417 = vdwg.mxu0
        %s1418 = scalar_lea.vmem %s6, 64
        %v1419 = vld [vmem:[%s1418] sm:$0xff]
        %v1420 = vld [vmem:[%s1418 + $0x8] sm:$0xff]
        %v1421 = vld [vmem:[%s1418 + $0x10] sm:$0xff]
        %v1422 = vld [vmem:[%s1418 + $0x18] sm:$0xff]
        %v1423 = vrot.slane %v1261, 2
        %v1424 = vsel %vm703, %v1423, 0
        %1426 = vmatprep.subr.mxu0 0.0
        %1427 = vmatpush1.msra.mxu0 0.0
        %1428 = vmatprep.subr.mxu0 0.0
        %1429 = vmatpush1.msra.mxu0 0.0
        %1430 = vmatprep.subr.mxu0 0.0
        %1431 = vmatpush1.msra.mxu0 0.0
        %1432 = vmatprep.subr.mxu0 0.0
        %1433 = vmatpush1.msra.mxu0 0.0
        %1434 = vmatprep.subr.mxu0 0.0
        %1435 = vmatpush1.msra.mxu0 0.0
        %1436 = vmatprep.subr.mxu0 0.0
        %1437 = vmatpush1.msra.mxu0 0.0
        %1438 = vmatprep.subr.mxu0 0.0
        %1439 = vmatpush1.msra.mxu0 0.0
        %1440 = vmatprep.subr.mxu0 0.0
        %1441 = vmatpush1.msra.mxu0 0.0
        %1442 = vmatprep.subr.mxu0 0.0
        %1443 = vmatpush1.msra.mxu0 0.0
        %1444 = vmatprep.subr.mxu0 0.0
        %1445 = vmatpush1.msra.mxu0 0.0
        %1446 = vmatprep.subr.mxu0 0.0
        %1447 = vmatpush1.msra.mxu0 0.0
        %1448 = vmatprep.subr.mxu0 0.0
        %1449 = vmatpush1.msra.mxu0 0.0
        %1450 = vmatprep.subr.mxu0 0.0
        %1451 = vmatpush1.msra.mxu0 %v1422
        %1452 = vmatprep.subr.mxu0 0.0
        %1453 = vmatpush1.msra.mxu0 %v1421
        %1454 = vmatprep.subr.mxu0 0.0
        %1455 = vmatpush1.msra.mxu0 %v1420
        %1456 = vmatprep.subr.mxu0 0.0
        %1457 = vmatpush1.msra.mxu0 %v1419
        %1458 = vmatprep.subr.mxu0 0.0
        %1459 = vmatpush2.msra.mxu0 0.0
        %1460 = vmatprep.subr.mxu0 0.0
        %1461 = vmatpush2.msra.mxu0 0.0
        %1462 = vmatprep.subr.mxu0 0.0
        %1463 = vmatpush2.msra.mxu0 0.0
        %1464 = vmatprep.subr.mxu0 0.0
        %1465 = vmatpush2.msra.mxu0 0.0
        %1466 = vmatprep.subr.mxu0 0.0
        %1467 = vmatpush2.msra.mxu0 0.0
        %1468 = vmatprep.subr.mxu0 0.0
        %1469 = vmatpush2.msra.mxu0 0.0
        %1470 = vmatprep.subr.mxu0 0.0
        %1471 = vmatpush2.msra.mxu0 0.0
        %1472 = vmatprep.subr.mxu0 0.0
        %1473 = vmatpush2.msra.mxu0 0.0
        %1474 = vmatprep.subr.mxu0 0.0
        %1475 = vmatpush2.msra.mxu0 0.0
        %1476 = vmatprep.subr.mxu0 0.0
        %1477 = vmatpush2.msra.mxu0 0.0
        %1478 = vmatprep.subr.mxu0 0.0
        %1479 = vmatpush2.msra.mxu0 0.0
        %1480 = vmatprep.subr.mxu0 0.0
        %1481 = vmatpush2.msra.mxu0 0.0
        %1482 = vmatprep.subr.mxu0 0.0
        %1483 = vmatpush2.msra.mxu0 0.0
        %1484 = vmatprep.subr.mxu0 0.0
        %1485 = vmatpush2.msra.mxu0 0.0
        %1486 = vmatprep.subr.mxu0 0.0
        %1487 = vmatpush2.msra.mxu0 0.0
        %1488 = vmatprep.subr.mxu0 0.0
        %1489 = vmatpush2.msra.mxu0 0.0
        %1490 = vmatprep.mubr.f32.mxu0 0.0
        %1491 = vmatmul.mubr.f32.gmra.mxu0 %v1424
        %v1492 = vpop.f32.mrf.mxu0
        %v1493 = vadd.f32 0.0, %v1492
        %v1494 = vpop.f32.mrf.mxu0
        %1495 = vdwg.mxu0
        %v1496 = vadd.f32 %v1415, %v1493
        %s1497 = scalar_lea.vmem %s6, 96
        %v1498 = vld [vmem:[%s1497] sm:$0xff]
        %v1499 = vld [vmem:[%s1497 + $0x8] sm:$0xff]
        %v1500 = vld [vmem:[%s1497 + $0x10] sm:$0xff]
        %v1501 = vld [vmem:[%s1497 + $0x18] sm:$0xff]
        %v1502 = vrot.slane %v1261, 3
        %v1503 = vsel %vm703, %v1502, 0
        %1505 = vmatprep.subr.mxu0 0.0
        %1506 = vmatpush1.msra.mxu0 0.0
        %1507 = vmatprep.subr.mxu0 0.0
        %1508 = vmatpush1.msra.mxu0 0.0
        %1509 = vmatprep.subr.mxu0 0.0
        %1510 = vmatpush1.msra.mxu0 0.0
        %1511 = vmatprep.subr.mxu0 0.0
        %1512 = vmatpush1.msra.mxu0 0.0
        %1513 = vmatprep.subr.mxu0 0.0
        %1514 = vmatpush1.msra.mxu0 0.0
        %1515 = vmatprep.subr.mxu0 0.0
        %1516 = vmatpush1.msra.mxu0 0.0
        %1517 = vmatprep.subr.mxu0 0.0
        %1518 = vmatpush1.msra.mxu0 0.0
        %1519 = vmatprep.subr.mxu0 0.0
        %1520 = vmatpush1.msra.mxu0 0.0
        %1521 = vmatprep.subr.mxu0 0.0
        %1522 = vmatpush1.msra.mxu0 0.0
        %1523 = vmatprep.subr.mxu0 0.0
        %1524 = vmatpush1.msra.mxu0 0.0
        %1525 = vmatprep.subr.mxu0 0.0
        %1526 = vmatpush1.msra.mxu0 0.0
        %1527 = vmatprep.subr.mxu0 0.0
        %1528 = vmatpush1.msra.mxu0 0.0
        %1529 = vmatprep.subr.mxu0 0.0
        %1530 = vmatpush1.msra.mxu0 %v1501
        %1531 = vmatprep.subr.mxu0 0.0
        %1532 = vmatpush1.msra.mxu0 %v1500
        %1533 = vmatprep.subr.mxu0 0.0
        %1534 = vmatpush1.msra.mxu0 %v1499
        %1535 = vmatprep.subr.mxu0 0.0
        %1536 = vmatpush1.msra.mxu0 %v1498
        %1537 = vmatprep.subr.mxu0 0.0
        %1538 = vmatpush2.msra.mxu0 0.0
        %1539 = vmatprep.subr.mxu0 0.0
        %1540 = vmatpush2.msra.mxu0 0.0
        %1541 = vmatprep.subr.mxu0 0.0
        %1542 = vmatpush2.msra.mxu0 0.0
        %1543 = vmatprep.subr.mxu0 0.0
        %1544 = vmatpush2.msra.mxu0 0.0
        %1545 = vmatprep.subr.mxu0 0.0
        %1546 = vmatpush2.msra.mxu0 0.0
        %1547 = vmatprep.subr.mxu0 0.0
        %1548 = vmatpush2.msra.mxu0 0.0
        %1549 = vmatprep.subr.mxu0 0.0
        %1550 = vmatpush2.msra.mxu0 0.0
        %1551 = vmatprep.subr.mxu0 0.0
        %1552 = vmatpush2.msra.mxu0 0.0
        %1553 = vmatprep.subr.mxu0 0.0
        %1554 = vmatpush2.msra.mxu0 0.0
        %1555 = vmatprep.subr.mxu0 0.0
        %1556 = vmatpush2.msra.mxu0 0.0
        %1557 = vmatprep.subr.mxu0 0.0
        %1558 = vmatpush2.msra.mxu0 0.0
        %1559 = vmatprep.subr.mxu0 0.0
        %1560 = vmatpush2.msra.mxu0 0.0
        %1561 = vmatprep.subr.mxu0 0.0
        %1562 = vmatpush2.msra.mxu0 0.0
        %1563 = vmatprep.subr.mxu0 0.0
        %1564 = vmatpush2.msra.mxu0 0.0
        %1565 = vmatprep.subr.mxu0 0.0
        %1566 = vmatpush2.msra.mxu0 0.0
        %1567 = vmatprep.subr.mxu0 0.0
        %1568 = vmatpush2.msra.mxu0 0.0
        %1569 = vmatprep.mubr.f32.mxu0 0.0
        %1570 = vmatmul.mubr.f32.gmra.mxu0 %v1503
        %v1571 = vpop.f32.mrf.mxu0
        %v1572 = vadd.f32 0.0, %v1571
        %v1573 = vpop.f32.mrf.mxu0
        %1574 = vdwg.mxu0
        %v1575 = vadd.f32 %v1496, %v1572
        %s1576 = scalar_lea.vmem %s6, 128
        %v1577 = vld [vmem:[%s1576] sm:$0xff]
        %v1578 = vld [vmem:[%s1576 + $0x8] sm:$0xff]
        %v1579 = vld [vmem:[%s1576 + $0x10] sm:$0xff]
        %v1580 = vld [vmem:[%s1576 + $0x18] sm:$0xff]
        %v1581 = vrot.slane %v1261, 4
        %v1582 = vsel %vm703, %v1581, 0
        %1584 = vmatprep.subr.mxu0 0.0
        %1585 = vmatpush1.msra.mxu0 0.0
        %1586 = vmatprep.subr.mxu0 0.0
        %1587 = vmatpush1.msra.mxu0 0.0
        %1588 = vmatprep.subr.mxu0 0.0
        %1589 = vmatpush1.msra.mxu0 0.0
        %1590 = vmatprep.subr.mxu0 0.0
        %1591 = vmatpush1.msra.mxu0 0.0
        %1592 = vmatprep.subr.mxu0 0.0
        %1593 = vmatpush1.msra.mxu0 0.0
        %1594 = vmatprep.subr.mxu0 0.0
        %1595 = vmatpush1.msra.mxu0 0.0
        %1596 = vmatprep.subr.mxu0 0.0
        %1597 = vmatpush1.msra.mxu0 0.0
        %1598 = vmatprep.subr.mxu0 0.0
        %1599 = vmatpush1.msra.mxu0 0.0
        %1600 = vmatprep.subr.mxu0 0.0
        %1601 = vmatpush1.msra.mxu0 0.0
        %1602 = vmatprep.subr.mxu0 0.0
        %1603 = vmatpush1.msra.mxu0 0.0
        %1604 = vmatprep.subr.mxu0 0.0
        %1605 = vmatpush1.msra.mxu0 0.0
        %1606 = vmatprep.subr.mxu0 0.0
        %1607 = vmatpush1.msra.mxu0 0.0
        %1608 = vmatprep.subr.mxu0 0.0
        %1609 = vmatpush1.msra.mxu0 %v1580
        %1610 = vmatprep.subr.mxu0 0.0
        %1611 = vmatpush1.msra.mxu0 %v1579
        %1612 = vmatprep.subr.mxu0 0.0
        %1613 = vmatpush1.msra.mxu0 %v1578
        %1614 = vmatprep.subr.mxu0 0.0
        %1615 = vmatpush1.msra.mxu0 %v1577
        %1616 = vmatprep.subr.mxu0 0.0
        %1617 = vmatpush2.msra.mxu0 0.0
        %1618 = vmatprep.subr.mxu0 0.0
        %1619 = vmatpush2.msra.mxu0 0.0
        %1620 = vmatprep.subr.mxu0 0.0
        %1621 = vmatpush2.msra.mxu0 0.0
        %1622 = vmatprep.subr.mxu0 0.0
        %1623 = vmatpush2.msra.mxu0 0.0
        %1624 = vmatprep.subr.mxu0 0.0
        %1625 = vmatpush2.msra.mxu0 0.0
        %1626 = vmatprep.subr.mxu0 0.0
        %1627 = vmatpush2.msra.mxu0 0.0
        %1628 = vmatprep.subr.mxu0 0.0
        %1629 = vmatpush2.msra.mxu0 0.0
        %1630 = vmatprep.subr.mxu0 0.0
        %1631 = vmatpush2.msra.mxu0 0.0
        %1632 = vmatprep.subr.mxu0 0.0
        %1633 = vmatpush2.msra.mxu0 0.0
        %1634 = vmatprep.subr.mxu0 0.0
        %1635 = vmatpush2.msra.mxu0 0.0
        %1636 = vmatprep.subr.mxu0 0.0
        %1637 = vmatpush2.msra.mxu0 0.0
        %1638 = vmatprep.subr.mxu0 0.0
        %1639 = vmatpush2.msra.mxu0 0.0
        %1640 = vmatprep.subr.mxu0 0.0
        %1641 = vmatpush2.msra.mxu0 0.0
        %1642 = vmatprep.subr.mxu0 0.0
        %1643 = vmatpush2.msra.mxu0 0.0
        %1644 = vmatprep.subr.mxu0 0.0
        %1645 = vmatpush2.msra.mxu0 0.0
        %1646 = vmatprep.subr.mxu0 0.0
        %1647 = vmatpush2.msra.mxu0 0.0
        %1648 = vmatprep.mubr.f32.mxu0 0.0
        %1649 = vmatmul.mubr.f32.gmra.mxu0 %v1582
        %v1650 = vpop.f32.mrf.mxu0
        %v1651 = vadd.f32 0.0, %v1650
        %v1652 = vpop.f32.mrf.mxu0
        %1653 = vdwg.mxu0
        %v1654 = vadd.f32 %v1575, %v1651
        %s1655 = scalar_lea.vmem %s6, 160
        %v1656 = vld [vmem:[%s1655] sm:$0xff]
        %v1657 = vld [vmem:[%s1655 + $0x8] sm:$0xff]
        %v1658 = vld [vmem:[%s1655 + $0x10] sm:$0xff]
        %v1659 = vld [vmem:[%s1655 + $0x18] sm:$0xff]
        %v1660 = vrot.slane %v1261, 5
        %v1661 = vsel %vm703, %v1660, 0
        %1663 = vmatprep.subr.mxu0 0.0
        %1664 = vmatpush1.msra.mxu0 0.0
        %1665 = vmatprep.subr.mxu0 0.0
        %1666 = vmatpush1.msra.mxu0 0.0
        %1667 = vmatprep.subr.mxu0 0.0
        %1668 = vmatpush1.msra.mxu0 0.0
        %1669 = vmatprep.subr.mxu0 0.0
        %1670 = vmatpush1.msra.mxu0 0.0
        %1671 = vmatprep.subr.mxu0 0.0
        %1672 = vmatpush1.msra.mxu0 0.0
        %1673 = vmatprep.subr.mxu0 0.0
        %1674 = vmatpush1.msra.mxu0 0.0
        %1675 = vmatprep.subr.mxu0 0.0
        %1676 = vmatpush1.msra.mxu0 0.0
        %1677 = vmatprep.subr.mxu0 0.0
        %1678 = vmatpush1.msra.mxu0 0.0
        %1679 = vmatprep.subr.mxu0 0.0
        %1680 = vmatpush1.msra.mxu0 0.0
        %1681 = vmatprep.subr.mxu0 0.0
        %1682 = vmatpush1.msra.mxu0 0.0
        %1683 = vmatprep.subr.mxu0 0.0
        %1684 = vmatpush1.msra.mxu0 0.0
        %1685 = vmatprep.subr.mxu0 0.0
        %1686 = vmatpush1.msra.mxu0 0.0
        %1687 = vmatprep.subr.mxu0 0.0
        %1688 = vmatpush1.msra.mxu0 %v1659
        %1689 = vmatprep.subr.mxu0 0.0
        %1690 = vmatpush1.msra.mxu0 %v1658
        %1691 = vmatprep.subr.mxu0 0.0
        %1692 = vmatpush1.msra.mxu0 %v1657
        %1693 = vmatprep.subr.mxu0 0.0
        %1694 = vmatpush1.msra.mxu0 %v1656
        %1695 = vmatprep.subr.mxu0 0.0
        %1696 = vmatpush2.msra.mxu0 0.0
        %1697 = vmatprep.subr.mxu0 0.0
        %1698 = vmatpush2.msra.mxu0 0.0
        %1699 = vmatprep.subr.mxu0 0.0
        %1700 = vmatpush2.msra.mxu0 0.0
        %1701 = vmatprep.subr.mxu0 0.0
        %1702 = vmatpush2.msra.mxu0 0.0
        %1703 = vmatprep.subr.mxu0 0.0
        %1704 = vmatpush2.msra.mxu0 0.0
        %1705 = vmatprep.subr.mxu0 0.0
        %1706 = vmatpush2.msra.mxu0 0.0
        %1707 = vmatprep.subr.mxu0 0.0
        %1708 = vmatpush2.msra.mxu0 0.0
        %1709 = vmatprep.subr.mxu0 0.0
        %1710 = vmatpush2.msra.mxu0 0.0
        %1711 = vmatprep.subr.mxu0 0.0
        %1712 = vmatpush2.msra.mxu0 0.0
        %1713 = vmatprep.subr.mxu0 0.0
        %1714 = vmatpush2.msra.mxu0 0.0
        %1715 = vmatprep.subr.mxu0 0.0
        %1716 = vmatpush2.msra.mxu0 0.0
        %1717 = vmatprep.subr.mxu0 0.0
        %1718 = vmatpush2.msra.mxu0 0.0
        %1719 = vmatprep.subr.mxu0 0.0
        %1720 = vmatpush2.msra.mxu0 0.0
        %1721 = vmatprep.subr.mxu0 0.0
        %1722 = vmatpush2.msra.mxu0 0.0
        %1723 = vmatprep.subr.mxu0 0.0
        %1724 = vmatpush2.msra.mxu0 0.0
        %1725 = vmatprep.subr.mxu0 0.0
        %1726 = vmatpush2.msra.mxu0 0.0
        %1727 = vmatprep.mubr.f32.mxu0 0.0
        %1728 = vmatmul.mubr.f32.gmra.mxu0 %v1661
        %v1729 = vpop.f32.mrf.mxu0
        %v1730 = vadd.f32 0.0, %v1729
        %v1731 = vpop.f32.mrf.mxu0
        %1732 = vdwg.mxu0
        %v1733 = vadd.f32 %v1654, %v1730
        %s1734 = scalar_lea.vmem %s6, 192
        %v1735 = vld [vmem:[%s1734] sm:$0xff]
        %v1736 = vld [vmem:[%s1734 + $0x8] sm:$0xff]
        %v1737 = vld [vmem:[%s1734 + $0x10] sm:$0xff]
        %v1738 = vld [vmem:[%s1734 + $0x18] sm:$0xff]
        %v1739 = vrot.slane %v1261, 6
        %v1740 = vsel %vm703, %v1739, 0
        %1742 = vmatprep.subr.mxu0 0.0
        %1743 = vmatpush1.msra.mxu0 0.0
        %1744 = vmatprep.subr.mxu0 0.0
        %1745 = vmatpush1.msra.mxu0 0.0
        %1746 = vmatprep.subr.mxu0 0.0
        %1747 = vmatpush1.msra.mxu0 0.0
        %1748 = vmatprep.subr.mxu0 0.0
        %1749 = vmatpush1.msra.mxu0 0.0
        %1750 = vmatprep.subr.mxu0 0.0
        %1751 = vmatpush1.msra.mxu0 0.0
        %1752 = vmatprep.subr.mxu0 0.0
        %1753 = vmatpush1.msra.mxu0 0.0
        %1754 = vmatprep.subr.mxu0 0.0
        %1755 = vmatpush1.msra.mxu0 0.0
        %1756 = vmatprep.subr.mxu0 0.0
        %1757 = vmatpush1.msra.mxu0 0.0
        %1758 = vmatprep.subr.mxu0 0.0
        %1759 = vmatpush1.msra.mxu0 0.0
        %1760 = vmatprep.subr.mxu0 0.0
        %1761 = vmatpush1.msra.mxu0 0.0
        %1762 = vmatprep.subr.mxu0 0.0
        %1763 = vmatpush1.msra.mxu0 0.0
        %1764 = vmatprep.subr.mxu0 0.0
        %1765 = vmatpush1.msra.mxu0 0.0
        %1766 = vmatprep.subr.mxu0 0.0
        %1767 = vmatpush1.msra.mxu0 %v1738
        %1768 = vmatprep.subr.mxu0 0.0
        %1769 = vmatpush1.msra.mxu0 %v1737
        %1770 = vmatprep.subr.mxu0 0.0
        %1771 = vmatpush1.msra.mxu0 %v1736
        %1772 = vmatprep.subr.mxu0 0.0
        %1773 = vmatpush1.msra.mxu0 %v1735
        %1774 = vmatprep.subr.mxu0 0.0
        %1775 = vmatpush2.msra.mxu0 0.0
        %1776 = vmatprep.subr.mxu0 0.0
        %1777 = vmatpush2.msra.mxu0 0.0
        %1778 = vmatprep.subr.mxu0 0.0
        %1779 = vmatpush2.msra.mxu0 0.0
        %1780 = vmatprep.subr.mxu0 0.0
        %1781 = vmatpush2.msra.mxu0 0.0
        %1782 = vmatprep.subr.mxu0 0.0
        %1783 = vmatpush2.msra.mxu0 0.0
        %1784 = vmatprep.subr.mxu0 0.0
        %1785 = vmatpush2.msra.mxu0 0.0
        %1786 = vmatprep.subr.mxu0 0.0
        %1787 = vmatpush2.msra.mxu0 0.0
        %1788 = vmatprep.subr.mxu0 0.0
        %1789 = vmatpush2.msra.mxu0 0.0
        %1790 = vmatprep.subr.mxu0 0.0
        %1791 = vmatpush2.msra.mxu0 0.0
        %1792 = vmatprep.subr.mxu0 0.0
        %1793 = vmatpush2.msra.mxu0 0.0
        %1794 = vmatprep.subr.mxu0 0.0
        %1795 = vmatpush2.msra.mxu0 0.0
        %1796 = vmatprep.subr.mxu0 0.0
        %1797 = vmatpush2.msra.mxu0 0.0
        %1798 = vmatprep.subr.mxu0 0.0
        %1799 = vmatpush2.msra.mxu0 0.0
        %1800 = vmatprep.subr.mxu0 0.0
        %1801 = vmatpush2.msra.mxu0 0.0
        %1802 = vmatprep.subr.mxu0 0.0
        %1803 = vmatpush2.msra.mxu0 0.0
        %1804 = vmatprep.subr.mxu0 0.0
        %1805 = vmatpush2.msra.mxu0 0.0
        %1806 = vmatprep.mubr.f32.mxu0 0.0
        %1807 = vmatmul.mubr.f32.gmra.mxu0 %v1740
        %v1808 = vpop.f32.mrf.mxu0
        %v1809 = vadd.f32 0.0, %v1808
        %v1810 = vpop.f32.mrf.mxu0
        %1811 = vdwg.mxu0
        %v1812 = vadd.f32 %v1733, %v1809
        %s1813 = scalar_lea.vmem %s6, 224
        %v1814 = vld [vmem:[%s1813] sm:$0xff]
        %v1815 = vld [vmem:[%s1813 + $0x8] sm:$0xff]
        %v1816 = vld [vmem:[%s1813 + $0x10] sm:$0xff]
        %v1817 = vld [vmem:[%s1813 + $0x18] sm:$0xff]
        %v1818 = vrot.slane %v1261, 7
        %v1819 = vsel %vm703, %v1818, 0
        %1821 = vmatprep.subr.mxu0 0.0
        %1822 = vmatpush1.msra.mxu0 0.0
        %1823 = vmatprep.subr.mxu0 0.0
        %1824 = vmatpush1.msra.mxu0 0.0
        %1825 = vmatprep.subr.mxu0 0.0
        %1826 = vmatpush1.msra.mxu0 0.0
        %1827 = vmatprep.subr.mxu0 0.0
        %1828 = vmatpush1.msra.mxu0 0.0
        %1829 = vmatprep.subr.mxu0 0.0
        %1830 = vmatpush1.msra.mxu0 0.0
        %1831 = vmatprep.subr.mxu0 0.0
        %1832 = vmatpush1.msra.mxu0 0.0
        %1833 = vmatprep.subr.mxu0 0.0
        %1834 = vmatpush1.msra.mxu0 0.0
        %1835 = vmatprep.subr.mxu0 0.0
        %1836 = vmatpush1.msra.mxu0 0.0
        %1837 = vmatprep.subr.mxu0 0.0
        %1838 = vmatpush1.msra.mxu0 0.0
        %1839 = vmatprep.subr.mxu0 0.0
        %1840 = vmatpush1.msra.mxu0 0.0
        %1841 = vmatprep.subr.mxu0 0.0
        %1842 = vmatpush1.msra.mxu0 0.0
        %1843 = vmatprep.subr.mxu0 0.0
        %1844 = vmatpush1.msra.mxu0 0.0
        %1845 = vmatprep.subr.mxu0 0.0
        %1846 = vmatpush1.msra.mxu0 %v1817
        %1847 = vmatprep.subr.mxu0 0.0
        %1848 = vmatpush1.msra.mxu0 %v1816
        %1849 = vmatprep.subr.mxu0 0.0
        %1850 = vmatpush1.msra.mxu0 %v1815
        %1851 = vmatprep.subr.mxu0 0.0
        %1852 = vmatpush1.msra.mxu0 %v1814
        %1853 = vmatprep.subr.mxu0 0.0
        %1854 = vmatpush2.msra.mxu0 0.0
        %1855 = vmatprep.subr.mxu0 0.0
        %1856 = vmatpush2.msra.mxu0 0.0
        %1857 = vmatprep.subr.mxu0 0.0
        %1858 = vmatpush2.msra.mxu0 0.0
        %1859 = vmatprep.subr.mxu0 0.0
        %1860 = vmatpush2.msra.mxu0 0.0
        %1861 = vmatprep.subr.mxu0 0.0
        %1862 = vmatpush2.msra.mxu0 0.0
        %1863 = vmatprep.subr.mxu0 0.0
        %1864 = vmatpush2.msra.mxu0 0.0
        %1865 = vmatprep.subr.mxu0 0.0
        %1866 = vmatpush2.msra.mxu0 0.0
        %1867 = vmatprep.subr.mxu0 0.0
        %1868 = vmatpush2.msra.mxu0 0.0
        %1869 = vmatprep.subr.mxu0 0.0
        %1870 = vmatpush2.msra.mxu0 0.0
        %1871 = vmatprep.subr.mxu0 0.0
        %1872 = vmatpush2.msra.mxu0 0.0
        %1873 = vmatprep.subr.mxu0 0.0
        %1874 = vmatpush2.msra.mxu0 0.0
        %1875 = vmatprep.subr.mxu0 0.0
        %1876 = vmatpush2.msra.mxu0 0.0
        %1877 = vmatprep.subr.mxu0 0.0
        %1878 = vmatpush2.msra.mxu0 0.0
        %1879 = vmatprep.subr.mxu0 0.0
        %1880 = vmatpush2.msra.mxu0 0.0
        %1881 = vmatprep.subr.mxu0 0.0
        %1882 = vmatpush2.msra.mxu0 0.0
        %1883 = vmatprep.subr.mxu0 0.0
        %1884 = vmatpush2.msra.mxu0 0.0
        %1885 = vmatprep.mubr.f32.mxu0 0.0
        %1886 = vmatmul.mubr.f32.gmra.mxu0 %v1819
        %v1887 = vpop.f32.mrf.mxu0
        %v1888 = vadd.f32 0.0, %v1887
        %v1889 = vpop.f32.mrf.mxu0
        %1890 = vdwg.mxu0
        %v1891 = vadd.f32 %v1812, %v1888
        %s1892 = scalar_lea.vmem %s6, 256
        %v1893 = vld [vmem:[%s1892] sm:$0xff]
        %v1894 = vld [vmem:[%s1892 + $0x8] sm:$0xff]
        %v1895 = vld [vmem:[%s1892 + $0x10] sm:$0xff]
        %v1896 = vld [vmem:[%s1892 + $0x18] sm:$0xff]
        %v1898 = vsel %vm703, %v1262, 0
        %1900 = vmatprep.subr.mxu0 0.0
        %1901 = vmatpush1.msra.mxu0 0.0
        %1902 = vmatprep.subr.mxu0 0.0
        %1903 = vmatpush1.msra.mxu0 0.0
        %1904 = vmatprep.subr.mxu0 0.0
        %1905 = vmatpush1.msra.mxu0 0.0
        %1906 = vmatprep.subr.mxu0 0.0
        %1907 = vmatpush1.msra.mxu0 0.0
        %1908 = vmatprep.subr.mxu0 0.0
        %1909 = vmatpush1.msra.mxu0 0.0
        %1910 = vmatprep.subr.mxu0 0.0
        %1911 = vmatpush1.msra.mxu0 0.0
        %1912 = vmatprep.subr.mxu0 0.0
        %1913 = vmatpush1.msra.mxu0 0.0
        %1914 = vmatprep.subr.mxu0 0.0
        %1915 = vmatpush1.msra.mxu0 0.0
        %1916 = vmatprep.subr.mxu0 0.0
        %1917 = vmatpush1.msra.mxu0 0.0
        %1918 = vmatprep.subr.mxu0 0.0
        %1919 = vmatpush1.msra.mxu0 0.0
        %1920 = vmatprep.subr.mxu0 0.0
        %1921 = vmatpush1.msra.mxu0 0.0
        %1922 = vmatprep.subr.mxu0 0.0
        %1923 = vmatpush1.msra.mxu0 0.0
        %1924 = vmatprep.subr.mxu0 0.0
        %1925 = vmatpush1.msra.mxu0 %v1896
        %1926 = vmatprep.subr.mxu0 0.0
        %1927 = vmatpush1.msra.mxu0 %v1895
        %1928 = vmatprep.subr.mxu0 0.0
        %1929 = vmatpush1.msra.mxu0 %v1894
        %1930 = vmatprep.subr.mxu0 0.0
        %1931 = vmatpush1.msra.mxu0 %v1893
        %1932 = vmatprep.subr.mxu0 0.0
        %1933 = vmatpush2.msra.mxu0 0.0
        %1934 = vmatprep.subr.mxu0 0.0
        %1935 = vmatpush2.msra.mxu0 0.0
        %1936 = vmatprep.subr.mxu0 0.0
        %1937 = vmatpush2.msra.mxu0 0.0
        %1938 = vmatprep.subr.mxu0 0.0
        %1939 = vmatpush2.msra.mxu0 0.0
        %1940 = vmatprep.subr.mxu0 0.0
        %1941 = vmatpush2.msra.mxu0 0.0
        %1942 = vmatprep.subr.mxu0 0.0
        %1943 = vmatpush2.msra.mxu0 0.0
        %1944 = vmatprep.subr.mxu0 0.0
        %1945 = vmatpush2.msra.mxu0 0.0
        %1946 = vmatprep.subr.mxu0 0.0
        %1947 = vmatpush2.msra.mxu0 0.0
        %1948 = vmatprep.subr.mxu0 0.0
        %1949 = vmatpush2.msra.mxu0 0.0
        %1950 = vmatprep.subr.mxu0 0.0
        %1951 = vmatpush2.msra.mxu0 0.0
        %1952 = vmatprep.subr.mxu0 0.0
        %1953 = vmatpush2.msra.mxu0 0.0
        %1954 = vmatprep.subr.mxu0 0.0
        %1955 = vmatpush2.msra.mxu0 0.0
        %1956 = vmatprep.subr.mxu0 0.0
        %1957 = vmatpush2.msra.mxu0 0.0
        %1958 = vmatprep.subr.mxu0 0.0
        %1959 = vmatpush2.msra.mxu0 0.0
        %1960 = vmatprep.subr.mxu0 0.0
        %1961 = vmatpush2.msra.mxu0 0.0
        %1962 = vmatprep.subr.mxu0 0.0
        %1963 = vmatpush2.msra.mxu0 0.0
        %1964 = vmatprep.mubr.f32.mxu0 0.0
        %1965 = vmatmul.mubr.f32.gmra.mxu0 %v1898
        %v1966 = vpop.f32.mrf.mxu0
        %v1967 = vadd.f32 0.0, %v1966
        %v1968 = vpop.f32.mrf.mxu0
        %1969 = vdwg.mxu0
        %v1970 = vadd.f32 %v1891, %v1967
        %s1971 = scalar_lea.vmem %s6, 288
        %v1972 = vld [vmem:[%s1971] sm:$0xff]
        %v1973 = vld [vmem:[%s1971 + $0x8] sm:$0xff]
        %v1974 = vld [vmem:[%s1971 + $0x10] sm:$0xff]
        %v1975 = vld [vmem:[%s1971 + $0x18] sm:$0xff]
        %v1976 = vrot.slane %v1262, 1
        %v1977 = vsel %vm703, %v1976, 0
        %1979 = vmatprep.subr.mxu0 0.0
        %1980 = vmatpush1.msra.mxu0 0.0
        %1981 = vmatprep.subr.mxu0 0.0
        %1982 = vmatpush1.msra.mxu0 0.0
        %1983 = vmatprep.subr.mxu0 0.0
        %1984 = vmatpush1.msra.mxu0 0.0
        %1985 = vmatprep.subr.mxu0 0.0
        %1986 = vmatpush1.msra.mxu0 0.0
        %1987 = vmatprep.subr.mxu0 0.0
        %1988 = vmatpush1.msra.mxu0 0.0
        %1989 = vmatprep.subr.mxu0 0.0
        %1990 = vmatpush1.msra.mxu0 0.0
        %1991 = vmatprep.subr.mxu0 0.0
        %1992 = vmatpush1.msra.mxu0 0.0
        %1993 = vmatprep.subr.mxu0 0.0
        %1994 = vmatpush1.msra.mxu0 0.0
        %1995 = vmatprep.subr.mxu0 0.0
        %1996 = vmatpush1.msra.mxu0 0.0
        %1997 = vmatprep.subr.mxu0 0.0
        %1998 = vmatpush1.msra.mxu0 0.0
        %1999 = vmatprep.subr.mxu0 0.0
        %2000 = vmatpush1.msra.mxu0 0.0
        %2001 = vmatprep.subr.mxu0 0.0
        %2002 = vmatpush1.msra.mxu0 0.0
        %2003 = vmatprep.subr.mxu0 0.0
        %2004 = vmatpush1.msra.mxu0 %v1975
        %2005 = vmatprep.subr.mxu0 0.0
        %2006 = vmatpush1.msra.mxu0 %v1974
        %2007 = vmatprep.subr.mxu0 0.0
        %2008 = vmatpush1.msra.mxu0 %v1973
        %2009 = vmatprep.subr.mxu0 0.0
        %2010 = vmatpush1.msra.mxu0 %v1972
        %2011 = vmatprep.subr.mxu0 0.0
        %2012 = vmatpush2.msra.mxu0 0.0
        %2013 = vmatprep.subr.mxu0 0.0
        %2014 = vmatpush2.msra.mxu0 0.0
        %2015 = vmatprep.subr.mxu0 0.0
        %2016 = vmatpush2.msra.mxu0 0.0
        %2017 = vmatprep.subr.mxu0 0.0
        %2018 = vmatpush2.msra.mxu0 0.0
        %2019 = vmatprep.subr.mxu0 0.0
        %2020 = vmatpush2.msra.mxu0 0.0
        %2021 = vmatprep.subr.mxu0 0.0
        %2022 = vmatpush2.msra.mxu0 0.0
        %2023 = vmatprep.subr.mxu0 0.0
        %2024 = vmatpush2.msra.mxu0 0.0
        %2025 = vmatprep.subr.mxu0 0.0
        %2026 = vmatpush2.msra.mxu0 0.0
        %2027 = vmatprep.subr.mxu0 0.0
        %2028 = vmatpush2.msra.mxu0 0.0
        %2029 = vmatprep.subr.mxu0 0.0
        %2030 = vmatpush2.msra.mxu0 0.0
        %2031 = vmatprep.subr.mxu0 0.0
        %2032 = vmatpush2.msra.mxu0 0.0
        %2033 = vmatprep.subr.mxu0 0.0
        %2034 = vmatpush2.msra.mxu0 0.0
        %2035 = vmatprep.subr.mxu0 0.0
        %2036 = vmatpush2.msra.mxu0 0.0
        %2037 = vmatprep.subr.mxu0 0.0
        %2038 = vmatpush2.msra.mxu0 0.0
        %2039 = vmatprep.subr.mxu0 0.0
        %2040 = vmatpush2.msra.mxu0 0.0
        %2041 = vmatprep.subr.mxu0 0.0
        %2042 = vmatpush2.msra.mxu0 0.0
        %2043 = vmatprep.mubr.f32.mxu0 0.0
        %2044 = vmatmul.mubr.f32.gmra.mxu0 %v1977
        %v2045 = vpop.f32.mrf.mxu0
        %v2046 = vadd.f32 0.0, %v2045
        %v2047 = vpop.f32.mrf.mxu0
        %2048 = vdwg.mxu0
        %v2049 = vadd.f32 %v1970, %v2046
        %s2050 = scalar_lea.vmem %s6, 320
        %v2051 = vld [vmem:[%s2050] sm:$0xff]
        %v2052 = vld [vmem:[%s2050 + $0x8] sm:$0xff]
        %v2053 = vld [vmem:[%s2050 + $0x10] sm:$0xff]
        %v2054 = vld [vmem:[%s2050 + $0x18] sm:$0xff]
        %v2055 = vrot.slane %v1262, 2
        %v2056 = vsel %vm703, %v2055, 0
        %2058 = vmatprep.subr.mxu0 0.0
        %2059 = vmatpush1.msra.mxu0 0.0
        %2060 = vmatprep.subr.mxu0 0.0
        %2061 = vmatpush1.msra.mxu0 0.0
        %2062 = vmatprep.subr.mxu0 0.0
        %2063 = vmatpush1.msra.mxu0 0.0
        %2064 = vmatprep.subr.mxu0 0.0
        %2065 = vmatpush1.msra.mxu0 0.0
        %2066 = vmatprep.subr.mxu0 0.0
        %2067 = vmatpush1.msra.mxu0 0.0
        %2068 = vmatprep.subr.mxu0 0.0
        %2069 = vmatpush1.msra.mxu0 0.0
        %2070 = vmatprep.subr.mxu0 0.0
        %2071 = vmatpush1.msra.mxu0 0.0
        %2072 = vmatprep.subr.mxu0 0.0
        %2073 = vmatpush1.msra.mxu0 0.0
        %2074 = vmatprep.subr.mxu0 0.0
        %2075 = vmatpush1.msra.mxu0 0.0
        %2076 = vmatprep.subr.mxu0 0.0
        %2077 = vmatpush1.msra.mxu0 0.0
        %2078 = vmatprep.subr.mxu0 0.0
        %2079 = vmatpush1.msra.mxu0 0.0
        %2080 = vmatprep.subr.mxu0 0.0
        %2081 = vmatpush1.msra.mxu0 0.0
        %2082 = vmatprep.subr.mxu0 0.0
        %2083 = vmatpush1.msra.mxu0 %v2054
        %2084 = vmatprep.subr.mxu0 0.0
        %2085 = vmatpush1.msra.mxu0 %v2053
        %2086 = vmatprep.subr.mxu0 0.0
        %2087 = vmatpush1.msra.mxu0 %v2052
        %2088 = vmatprep.subr.mxu0 0.0
        %2089 = vmatpush1.msra.mxu0 %v2051
        %2090 = vmatprep.subr.mxu0 0.0
        %2091 = vmatpush2.msra.mxu0 0.0
        %2092 = vmatprep.subr.mxu0 0.0
        %2093 = vmatpush2.msra.mxu0 0.0
        %2094 = vmatprep.subr.mxu0 0.0
        %2095 = vmatpush2.msra.mxu0 0.0
        %2096 = vmatprep.subr.mxu0 0.0
        %2097 = vmatpush2.msra.mxu0 0.0
        %2098 = vmatprep.subr.mxu0 0.0
        %2099 = vmatpush2.msra.mxu0 0.0
        %2100 = vmatprep.subr.mxu0 0.0
        %2101 = vmatpush2.msra.mxu0 0.0
        %2102 = vmatprep.subr.mxu0 0.0
        %2103 = vmatpush2.msra.mxu0 0.0
        %2104 = vmatprep.subr.mxu0 0.0
        %2105 = vmatpush2.msra.mxu0 0.0
        %2106 = vmatprep.subr.mxu0 0.0
        %2107 = vmatpush2.msra.mxu0 0.0
        %2108 = vmatprep.subr.mxu0 0.0
        %2109 = vmatpush2.msra.mxu0 0.0
        %2110 = vmatprep.subr.mxu0 0.0
        %2111 = vmatpush2.msra.mxu0 0.0
        %2112 = vmatprep.subr.mxu0 0.0
        %2113 = vmatpush2.msra.mxu0 0.0
        %2114 = vmatprep.subr.mxu0 0.0
        %2115 = vmatpush2.msra.mxu0 0.0
        %2116 = vmatprep.subr.mxu0 0.0
        %2117 = vmatpush2.msra.mxu0 0.0
        %2118 = vmatprep.subr.mxu0 0.0
        %2119 = vmatpush2.msra.mxu0 0.0
        %2120 = vmatprep.subr.mxu0 0.0
        %2121 = vmatpush2.msra.mxu0 0.0
        %2122 = vmatprep.mubr.f32.mxu0 0.0
        %2123 = vmatmul.mubr.f32.gmra.mxu0 %v2056
        %v2124 = vpop.f32.mrf.mxu0
        %v2125 = vadd.f32 0.0, %v2124
        %v2126 = vpop.f32.mrf.mxu0
        %2127 = vdwg.mxu0
        %v2128 = vadd.f32 %v2049, %v2125
        %s2129 = scalar_lea.vmem %s6, 352
        %v2130 = vld [vmem:[%s2129] sm:$0xff]
        %v2131 = vld [vmem:[%s2129 + $0x8] sm:$0xff]
        %v2132 = vld [vmem:[%s2129 + $0x10] sm:$0xff]
        %v2133 = vld [vmem:[%s2129 + $0x18] sm:$0xff]
        %v2134 = vrot.slane %v1262, 3
        %v2135 = vsel %vm703, %v2134, 0
        %2137 = vmatprep.subr.mxu0 0.0
        %2138 = vmatpush1.msra.mxu0 0.0
        %2139 = vmatprep.subr.mxu0 0.0
        %2140 = vmatpush1.msra.mxu0 0.0
        %2141 = vmatprep.subr.mxu0 0.0
        %2142 = vmatpush1.msra.mxu0 0.0
        %2143 = vmatprep.subr.mxu0 0.0
        %2144 = vmatpush1.msra.mxu0 0.0
        %2145 = vmatprep.subr.mxu0 0.0
        %2146 = vmatpush1.msra.mxu0 0.0
        %2147 = vmatprep.subr.mxu0 0.0
        %2148 = vmatpush1.msra.mxu0 0.0
        %2149 = vmatprep.subr.mxu0 0.0
        %2150 = vmatpush1.msra.mxu0 0.0
        %2151 = vmatprep.subr.mxu0 0.0
        %2152 = vmatpush1.msra.mxu0 0.0
        %2153 = vmatprep.subr.mxu0 0.0
        %2154 = vmatpush1.msra.mxu0 0.0
        %2155 = vmatprep.subr.mxu0 0.0
        %2156 = vmatpush1.msra.mxu0 0.0
        %2157 = vmatprep.subr.mxu0 0.0
        %2158 = vmatpush1.msra.mxu0 0.0
        %2159 = vmatprep.subr.mxu0 0.0
        %2160 = vmatpush1.msra.mxu0 0.0
        %2161 = vmatprep.subr.mxu0 0.0
        %2162 = vmatpush1.msra.mxu0 %v2133
        %2163 = vmatprep.subr.mxu0 0.0
        %2164 = vmatpush1.msra.mxu0 %v2132
        %2165 = vmatprep.subr.mxu0 0.0
        %2166 = vmatpush1.msra.mxu0 %v2131
        %2167 = vmatprep.subr.mxu0 0.0
        %2168 = vmatpush1.msra.mxu0 %v2130
        %2169 = vmatprep.subr.mxu0 0.0
        %2170 = vmatpush2.msra.mxu0 0.0
        %2171 = vmatprep.subr.mxu0 0.0
        %2172 = vmatpush2.msra.mxu0 0.0
        %2173 = vmatprep.subr.mxu0 0.0
        %2174 = vmatpush2.msra.mxu0 0.0
        %2175 = vmatprep.subr.mxu0 0.0
        %2176 = vmatpush2.msra.mxu0 0.0
        %2177 = vmatprep.subr.mxu0 0.0
        %2178 = vmatpush2.msra.mxu0 0.0
        %2179 = vmatprep.subr.mxu0 0.0
        %2180 = vmatpush2.msra.mxu0 0.0
        %2181 = vmatprep.subr.mxu0 0.0
        %2182 = vmatpush2.msra.mxu0 0.0
        %2183 = vmatprep.subr.mxu0 0.0
        %2184 = vmatpush2.msra.mxu0 0.0
        %2185 = vmatprep.subr.mxu0 0.0
        %2186 = vmatpush2.msra.mxu0 0.0
        %2187 = vmatprep.subr.mxu0 0.0
        %2188 = vmatpush2.msra.mxu0 0.0
        %2189 = vmatprep.subr.mxu0 0.0
        %2190 = vmatpush2.msra.mxu0 0.0
        %2191 = vmatprep.subr.mxu0 0.0
        %2192 = vmatpush2.msra.mxu0 0.0
        %2193 = vmatprep.subr.mxu0 0.0
        %2194 = vmatpush2.msra.mxu0 0.0
        %2195 = vmatprep.subr.mxu0 0.0
        %2196 = vmatpush2.msra.mxu0 0.0
        %2197 = vmatprep.subr.mxu0 0.0
        %2198 = vmatpush2.msra.mxu0 0.0
        %2199 = vmatprep.subr.mxu0 0.0
        %2200 = vmatpush2.msra.mxu0 0.0
        %2201 = vmatprep.mubr.f32.mxu0 0.0
        %2202 = vmatmul.mubr.f32.gmra.mxu0 %v2135
        %v2203 = vpop.f32.mrf.mxu0
        %v2204 = vadd.f32 0.0, %v2203
        %v2205 = vpop.f32.mrf.mxu0
        %2206 = vdwg.mxu0
        %v2207 = vadd.f32 %v2128, %v2204
        %s2208 = scalar_lea.vmem %s6, 384
        %v2209 = vld [vmem:[%s2208] sm:$0xff]
        %v2210 = vld [vmem:[%s2208 + $0x8] sm:$0xff]
        %v2211 = vld [vmem:[%s2208 + $0x10] sm:$0xff]
        %v2212 = vld [vmem:[%s2208 + $0x18] sm:$0xff]
        %v2213 = vrot.slane %v1262, 4
        %v2214 = vsel %vm703, %v2213, 0
        %2216 = vmatprep.subr.mxu0 0.0
        %2217 = vmatpush1.msra.mxu0 0.0
        %2218 = vmatprep.subr.mxu0 0.0
        %2219 = vmatpush1.msra.mxu0 0.0
        %2220 = vmatprep.subr.mxu0 0.0
        %2221 = vmatpush1.msra.mxu0 0.0
        %2222 = vmatprep.subr.mxu0 0.0
        %2223 = vmatpush1.msra.mxu0 0.0
        %2224 = vmatprep.subr.mxu0 0.0
        %2225 = vmatpush1.msra.mxu0 0.0
        %2226 = vmatprep.subr.mxu0 0.0
        %2227 = vmatpush1.msra.mxu0 0.0
        %2228 = vmatprep.subr.mxu0 0.0
        %2229 = vmatpush1.msra.mxu0 0.0
        %2230 = vmatprep.subr.mxu0 0.0
        %2231 = vmatpush1.msra.mxu0 0.0
        %2232 = vmatprep.subr.mxu0 0.0
        %2233 = vmatpush1.msra.mxu0 0.0
        %2234 = vmatprep.subr.mxu0 0.0
        %2235 = vmatpush1.msra.mxu0 0.0
        %2236 = vmatprep.subr.mxu0 0.0
        %2237 = vmatpush1.msra.mxu0 0.0
        %2238 = vmatprep.subr.mxu0 0.0
        %2239 = vmatpush1.msra.mxu0 0.0
        %2240 = vmatprep.subr.mxu0 0.0
        %2241 = vmatpush1.msra.mxu0 %v2212
        %2242 = vmatprep.subr.mxu0 0.0
        %2243 = vmatpush1.msra.mxu0 %v2211
        %2244 = vmatprep.subr.mxu0 0.0
        %2245 = vmatpush1.msra.mxu0 %v2210
        %2246 = vmatprep.subr.mxu0 0.0
        %2247 = vmatpush1.msra.mxu0 %v2209
        %2248 = vmatprep.subr.mxu0 0.0
        %2249 = vmatpush2.msra.mxu0 0.0
        %2250 = vmatprep.subr.mxu0 0.0
        %2251 = vmatpush2.msra.mxu0 0.0
        %2252 = vmatprep.subr.mxu0 0.0
        %2253 = vmatpush2.msra.mxu0 0.0
        %2254 = vmatprep.subr.mxu0 0.0
        %2255 = vmatpush2.msra.mxu0 0.0
        %2256 = vmatprep.subr.mxu0 0.0
        %2257 = vmatpush2.msra.mxu0 0.0
        %2258 = vmatprep.subr.mxu0 0.0
        %2259 = vmatpush2.msra.mxu0 0.0
        %2260 = vmatprep.subr.mxu0 0.0
        %2261 = vmatpush2.msra.mxu0 0.0
        %2262 = vmatprep.subr.mxu0 0.0
        %2263 = vmatpush2.msra.mxu0 0.0
        %2264 = vmatprep.subr.mxu0 0.0
        %2265 = vmatpush2.msra.mxu0 0.0
        %2266 = vmatprep.subr.mxu0 0.0
        %2267 = vmatpush2.msra.mxu0 0.0
        %2268 = vmatprep.subr.mxu0 0.0
        %2269 = vmatpush2.msra.mxu0 0.0
        %2270 = vmatprep.subr.mxu0 0.0
        %2271 = vmatpush2.msra.mxu0 0.0
        %2272 = vmatprep.subr.mxu0 0.0
        %2273 = vmatpush2.msra.mxu0 0.0
        %2274 = vmatprep.subr.mxu0 0.0
        %2275 = vmatpush2.msra.mxu0 0.0
        %2276 = vmatprep.subr.mxu0 0.0
        %2277 = vmatpush2.msra.mxu0 0.0
        %2278 = vmatprep.subr.mxu0 0.0
        %2279 = vmatpush2.msra.mxu0 0.0
        %2280 = vmatprep.mubr.f32.mxu0 0.0
        %2281 = vmatmul.mubr.f32.gmra.mxu0 %v2214
        %v2282 = vpop.f32.mrf.mxu0
        %v2283 = vadd.f32 0.0, %v2282
        %v2284 = vpop.f32.mrf.mxu0
        %2285 = vdwg.mxu0
        %v2286 = vadd.f32 %v2207, %v2283
        %s2287 = scalar_lea.vmem %s6, 416
        %v2288 = vld [vmem:[%s2287] sm:$0xff]
        %v2289 = vld [vmem:[%s2287 + $0x8] sm:$0xff]
        %v2290 = vld [vmem:[%s2287 + $0x10] sm:$0xff]
        %v2291 = vld [vmem:[%s2287 + $0x18] sm:$0xff]
        %v2292 = vrot.slane %v1262, 5
        %v2293 = vsel %vm703, %v2292, 0
        %2295 = vmatprep.subr.mxu0 0.0
        %2296 = vmatpush1.msra.mxu0 0.0
        %2297 = vmatprep.subr.mxu0 0.0
        %2298 = vmatpush1.msra.mxu0 0.0
        %2299 = vmatprep.subr.mxu0 0.0
        %2300 = vmatpush1.msra.mxu0 0.0
        %2301 = vmatprep.subr.mxu0 0.0
        %2302 = vmatpush1.msra.mxu0 0.0
        %2303 = vmatprep.subr.mxu0 0.0
        %2304 = vmatpush1.msra.mxu0 0.0
        %2305 = vmatprep.subr.mxu0 0.0
        %2306 = vmatpush1.msra.mxu0 0.0
        %2307 = vmatprep.subr.mxu0 0.0
        %2308 = vmatpush1.msra.mxu0 0.0
        %2309 = vmatprep.subr.mxu0 0.0
        %2310 = vmatpush1.msra.mxu0 0.0
        %2311 = vmatprep.subr.mxu0 0.0
        %2312 = vmatpush1.msra.mxu0 0.0
        %2313 = vmatprep.subr.mxu0 0.0
        %2314 = vmatpush1.msra.mxu0 0.0
        %2315 = vmatprep.subr.mxu0 0.0
        %2316 = vmatpush1.msra.mxu0 0.0
        %2317 = vmatprep.subr.mxu0 0.0
        %2318 = vmatpush1.msra.mxu0 0.0
        %2319 = vmatprep.subr.mxu0 0.0
        %2320 = vmatpush1.msra.mxu0 %v2291
        %2321 = vmatprep.subr.mxu0 0.0
        %2322 = vmatpush1.msra.mxu0 %v2290
        %2323 = vmatprep.subr.mxu0 0.0
        %2324 = vmatpush1.msra.mxu0 %v2289
        %2325 = vmatprep.subr.mxu0 0.0
        %2326 = vmatpush1.msra.mxu0 %v2288
        %2327 = vmatprep.subr.mxu0 0.0
        %2328 = vmatpush2.msra.mxu0 0.0
        %2329 = vmatprep.subr.mxu0 0.0
        %2330 = vmatpush2.msra.mxu0 0.0
        %2331 = vmatprep.subr.mxu0 0.0
        %2332 = vmatpush2.msra.mxu0 0.0
        %2333 = vmatprep.subr.mxu0 0.0
        %2334 = vmatpush2.msra.mxu0 0.0
        %2335 = vmatprep.subr.mxu0 0.0
        %2336 = vmatpush2.msra.mxu0 0.0
        %2337 = vmatprep.subr.mxu0 0.0
        %2338 = vmatpush2.msra.mxu0 0.0
        %2339 = vmatprep.subr.mxu0 0.0
        %2340 = vmatpush2.msra.mxu0 0.0
        %2341 = vmatprep.subr.mxu0 0.0
        %2342 = vmatpush2.msra.mxu0 0.0
        %2343 = vmatprep.subr.mxu0 0.0
        %2344 = vmatpush2.msra.mxu0 0.0
        %2345 = vmatprep.subr.mxu0 0.0
        %2346 = vmatpush2.msra.mxu0 0.0
        %2347 = vmatprep.subr.mxu0 0.0
        %2348 = vmatpush2.msra.mxu0 0.0
        %2349 = vmatprep.subr.mxu0 0.0
        %2350 = vmatpush2.msra.mxu0 0.0
        %2351 = vmatprep.subr.mxu0 0.0
        %2352 = vmatpush2.msra.mxu0 0.0
        %2353 = vmatprep.subr.mxu0 0.0
        %2354 = vmatpush2.msra.mxu0 0.0
        %2355 = vmatprep.subr.mxu0 0.0
        %2356 = vmatpush2.msra.mxu0 0.0
        %2357 = vmatprep.subr.mxu0 0.0
        %2358 = vmatpush2.msra.mxu0 0.0
        %2359 = vmatprep.mubr.f32.mxu0 0.0
        %2360 = vmatmul.mubr.f32.gmra.mxu0 %v2293
        %v2361 = vpop.f32.mrf.mxu0
        %v2362 = vadd.f32 0.0, %v2361
        %v2363 = vpop.f32.mrf.mxu0
        %2364 = vdwg.mxu0
        %v2365 = vadd.f32 %v2286, %v2362
        %s2366 = scalar_lea.vmem %s6, 448
        %v2367 = vld [vmem:[%s2366] sm:$0xff]
        %v2368 = vld [vmem:[%s2366 + $0x8] sm:$0xff]
        %v2369 = vld [vmem:[%s2366 + $0x10] sm:$0xff]
        %v2370 = vld [vmem:[%s2366 + $0x18] sm:$0xff]
        %v2371 = vrot.slane %v1262, 6
        %v2372 = vsel %vm703, %v2371, 0
        %2374 = vmatprep.subr.mxu0 0.0
        %2375 = vmatpush1.msra.mxu0 0.0
        %2376 = vmatprep.subr.mxu0 0.0
        %2377 = vmatpush1.msra.mxu0 0.0
        %2378 = vmatprep.subr.mxu0 0.0
        %2379 = vmatpush1.msra.mxu0 0.0
        %2380 = vmatprep.subr.mxu0 0.0
        %2381 = vmatpush1.msra.mxu0 0.0
        %2382 = vmatprep.subr.mxu0 0.0
        %2383 = vmatpush1.msra.mxu0 0.0
        %2384 = vmatprep.subr.mxu0 0.0
        %2385 = vmatpush1.msra.mxu0 0.0
        %2386 = vmatprep.subr.mxu0 0.0
        %2387 = vmatpush1.msra.mxu0 0.0
        %2388 = vmatprep.subr.mxu0 0.0
        %2389 = vmatpush1.msra.mxu0 0.0
        %2390 = vmatprep.subr.mxu0 0.0
        %2391 = vmatpush1.msra.mxu0 0.0
        %2392 = vmatprep.subr.mxu0 0.0
        %2393 = vmatpush1.msra.mxu0 0.0
        %2394 = vmatprep.subr.mxu0 0.0
        %2395 = vmatpush1.msra.mxu0 0.0
        %2396 = vmatprep.subr.mxu0 0.0
        %2397 = vmatpush1.msra.mxu0 0.0
        %2398 = vmatprep.subr.mxu0 0.0
        %2399 = vmatpush1.msra.mxu0 %v2370
        %2400 = vmatprep.subr.mxu0 0.0
        %2401 = vmatpush1.msra.mxu0 %v2369
        %2402 = vmatprep.subr.mxu0 0.0
        %2403 = vmatpush1.msra.mxu0 %v2368
        %2404 = vmatprep.subr.mxu0 0.0
        %2405 = vmatpush1.msra.mxu0 %v2367
        %2406 = vmatprep.subr.mxu0 0.0
        %2407 = vmatpush2.msra.mxu0 0.0
        %2408 = vmatprep.subr.mxu0 0.0
        %2409 = vmatpush2.msra.mxu0 0.0
        %2410 = vmatprep.subr.mxu0 0.0
        %2411 = vmatpush2.msra.mxu0 0.0
        %2412 = vmatprep.subr.mxu0 0.0
        %2413 = vmatpush2.msra.mxu0 0.0
        %2414 = vmatprep.subr.mxu0 0.0
        %2415 = vmatpush2.msra.mxu0 0.0
        %2416 = vmatprep.subr.mxu0 0.0
        %2417 = vmatpush2.msra.mxu0 0.0
        %2418 = vmatprep.subr.mxu0 0.0
        %2419 = vmatpush2.msra.mxu0 0.0
        %2420 = vmatprep.subr.mxu0 0.0
        %2421 = vmatpush2.msra.mxu0 0.0
        %2422 = vmatprep.subr.mxu0 0.0
        %2423 = vmatpush2.msra.mxu0 0.0
        %2424 = vmatprep.subr.mxu0 0.0
        %2425 = vmatpush2.msra.mxu0 0.0
        %2426 = vmatprep.subr.mxu0 0.0
        %2427 = vmatpush2.msra.mxu0 0.0
        %2428 = vmatprep.subr.mxu0 0.0
        %2429 = vmatpush2.msra.mxu0 0.0
        %2430 = vmatprep.subr.mxu0 0.0
        %2431 = vmatpush2.msra.mxu0 0.0
        %2432 = vmatprep.subr.mxu0 0.0
        %2433 = vmatpush2.msra.mxu0 0.0
        %2434 = vmatprep.subr.mxu0 0.0
        %2435 = vmatpush2.msra.mxu0 0.0
        %2436 = vmatprep.subr.mxu0 0.0
        %2437 = vmatpush2.msra.mxu0 0.0
        %2438 = vmatprep.mubr.f32.mxu0 0.0
        %2439 = vmatmul.mubr.f32.gmra.mxu0 %v2372
        %v2440 = vpop.f32.mrf.mxu0
        %v2441 = vadd.f32 0.0, %v2440
        %v2442 = vpop.f32.mrf.mxu0
        %2443 = vdwg.mxu0
        %v2444 = vadd.f32 %v2365, %v2441
        %s2445 = scalar_lea.vmem %s6, 480
        %v2446 = vld [vmem:[%s2445] sm:$0xff]
        %v2447 = vld [vmem:[%s2445 + $0x8] sm:$0xff]
        %v2448 = vld [vmem:[%s2445 + $0x10] sm:$0xff]
        %v2449 = vld [vmem:[%s2445 + $0x18] sm:$0xff]
        %v2450 = vrot.slane %v1262, 7
        %v2451 = vsel %vm703, %v2450, 0
        %2453 = vmatprep.subr.mxu0 0.0
        %2454 = vmatpush1.msra.mxu0 0.0
        %2455 = vmatprep.subr.mxu0 0.0
        %2456 = vmatpush1.msra.mxu0 0.0
        %2457 = vmatprep.subr.mxu0 0.0
        %2458 = vmatpush1.msra.mxu0 0.0
        %2459 = vmatprep.subr.mxu0 0.0
        %2460 = vmatpush1.msra.mxu0 0.0
        %2461 = vmatprep.subr.mxu0 0.0
        %2462 = vmatpush1.msra.mxu0 0.0
        %2463 = vmatprep.subr.mxu0 0.0
        %2464 = vmatpush1.msra.mxu0 0.0
        %2465 = vmatprep.subr.mxu0 0.0
        %2466 = vmatpush1.msra.mxu0 0.0
        %2467 = vmatprep.subr.mxu0 0.0
        %2468 = vmatpush1.msra.mxu0 0.0
        %2469 = vmatprep.subr.mxu0 0.0
        %2470 = vmatpush1.msra.mxu0 0.0
        %2471 = vmatprep.subr.mxu0 0.0
        %2472 = vmatpush1.msra.mxu0 0.0
        %2473 = vmatprep.subr.mxu0 0.0
        %2474 = vmatpush1.msra.mxu0 0.0
        %2475 = vmatprep.subr.mxu0 0.0
        %2476 = vmatpush1.msra.mxu0 0.0
        %2477 = vmatprep.subr.mxu0 0.0
        %2478 = vmatpush1.msra.mxu0 %v2449
        %2479 = vmatprep.subr.mxu0 0.0
        %2480 = vmatpush1.msra.mxu0 %v2448
        %2481 = vmatprep.subr.mxu0 0.0
        %2482 = vmatpush1.msra.mxu0 %v2447
        %2483 = vmatprep.subr.mxu0 0.0
        %2484 = vmatpush1.msra.mxu0 %v2446
        %2485 = vmatprep.subr.mxu0 0.0
        %2486 = vmatpush2.msra.mxu0 0.0
        %2487 = vmatprep.subr.mxu0 0.0
        %2488 = vmatpush2.msra.mxu0 0.0
        %2489 = vmatprep.subr.mxu0 0.0
        %2490 = vmatpush2.msra.mxu0 0.0
        %2491 = vmatprep.subr.mxu0 0.0
        %2492 = vmatpush2.msra.mxu0 0.0
        %2493 = vmatprep.subr.mxu0 0.0
        %2494 = vmatpush2.msra.mxu0 0.0
        %2495 = vmatprep.subr.mxu0 0.0
        %2496 = vmatpush2.msra.mxu0 0.0
        %2497 = vmatprep.subr.mxu0 0.0
        %2498 = vmatpush2.msra.mxu0 0.0
        %2499 = vmatprep.subr.mxu0 0.0
        %2500 = vmatpush2.msra.mxu0 0.0
        %2501 = vmatprep.subr.mxu0 0.0
        %2502 = vmatpush2.msra.mxu0 0.0
        %2503 = vmatprep.subr.mxu0 0.0
        %2504 = vmatpush2.msra.mxu0 0.0
        %2505 = vmatprep.subr.mxu0 0.0
        %2506 = vmatpush2.msra.mxu0 0.0
        %2507 = vmatprep.subr.mxu0 0.0
        %2508 = vmatpush2.msra.mxu0 0.0
        %2509 = vmatprep.subr.mxu0 0.0
        %2510 = vmatpush2.msra.mxu0 0.0
        %2511 = vmatprep.subr.mxu0 0.0
        %2512 = vmatpush2.msra.mxu0 0.0
        %2513 = vmatprep.subr.mxu0 0.0
        %2514 = vmatpush2.msra.mxu0 0.0
        %2515 = vmatprep.subr.mxu0 0.0
        %2516 = vmatpush2.msra.mxu0 0.0
        %2517 = vmatprep.mubr.f32.mxu0 0.0
        %2518 = vmatmul.mubr.f32.gmra.mxu0 %v2451
        %v2519 = vpop.f32.mrf.mxu0
        %v2520 = vadd.f32 0.0, %v2519
        %v2521 = vpop.f32.mrf.mxu0
        %2522 = vdwg.mxu0
        %v2523 = vadd.f32 %v2444, %v2520
        %v2524 = vld [vmem:[%s7] sm:$0x1]
        %v2525 = vadd.f32 %v2523, %v2524
        %vm2526 = vcmask 122880
        %2527 = vst.msk [vmem:[%s297] sm:$0x1] %vm2526, %v2525
        %s2528 = sand.u32 %s203, 1
        %s2529 = scalar_lea.sflag [#allocation3], %s2528
        %s2530 = sand.u32 %s203, 1
        %s2531 = scalar_lea.vmem [#allocation2], %s2530
        // Predicated region
        $region53: #{cext_forward.1} parent=51 // pred_check
          %p2532 = pneg %p213
        $region54: #{cext_forward.1} parent=51 // pred_check_branch
          %2534 = sbr.rel (%p2532) target = $region56
        $region55: #{cext_forward.1} parent=51 // pred_region
          %s2536 = ssub.s32 16, 16
          %2537 = vsyncadd %s2529, %s2536
          %s2538 = smul.addr %s22, 16
          %s2539 = scalar_lea.hbm %s8, %s2538
          %s2541 = sshll.u32 %s2531, 4
          %s2542 = int_to_ptr.vmem [resolvable:$true] %s2541
          %2544 = dma.vmem_to_hbm [thread:$0]  %s2542, 16, %s2539, %s2529
        $region56: #{cext_forward.1} parent=51 // pred_fallthru
          _
      $region52: #{cext_forward.1} parent=5 // pred_fallthru
        _
      %p2545 = scmp.le.s32.totalorder 2, %s17
      // Predicated region
      $region57: #{cext_forward.1} parent=5 // pred_check
        %p2546 = pneg %p2545
      $region58: #{cext_forward.1} parent=5 // pred_check_branch
        %2548 = sbr.rel (%p2546) target = $region60
      $region59: #{cext_forward.1} parent=5 // pred_region
        %s2549 = ssub.s32 %s17, 2
        // Predicated region
        $region61: #{cext_forward.1} parent=59 // pred_check
          %p2550 = pneg %p219
        $region62: #{cext_forward.1} parent=59 // pred_check_branch
          %2552 = sbr.rel (%p2550) target = $region64
        $region63: #{cext_forward.1} parent=59 // pred_region
          %s2553 = sand.u32 %s204, 1
          %s2554 = scalar_lea.sflag [#allocation3], %s2553
          %s2555 = sand.u32 %s204, 1
          %s2556 = scalar_lea.vmem [#allocation2], %s2555
          %2557 = dma.done %s2554, 16
        $region64: #{cext_forward.1} parent=59 // pred_fallthru
          _
      $region60: #{cext_forward.1} parent=5 // pred_fallthru
        _
    $region6: #{cext_forward.1} parent=1 // loop_footer
      %s21 = sadd.s32 1, %s17
    $region7: #{cext_forward.1} parent=1 // loop_footer_branch
      %16 = sbr.rel target = $region3
    $region8: #{cext_forward.1} parent=1 // loop_exit
      _
    %2558 = vsyncpa [#allocation3], 1
    %s2559 = scalar_lea.sflag [#allocation3], 1
    %2560 = vsyncpa %s2559, 1

</llo_original>
